<compile_context>
chip_gen: v7x
topology: tpu7x:2x2x1
jax: 0.10.0
libtpu: 0.0.40
codegen_flags: <defaults>
</compile_context>

<pallas_src>
import functools

import jax
import jax.numpy as jnp
from jax.experimental import pallas as pl
from jax.experimental.pallas import tpu as pltpu


def _round_up(n, m):
    return ((n + m - 1) // m) * m


def cross_network_kernel(x_ref, m_ref, b_ref, o_ref):
    # x_ref: (TR, DP)    packed x_0 tile (P batch rows folded into the 128 lanes)
    # m_ref: (L, DP, DP) per-layer block-diagonal reduce+broadcast matrices (resident)
    # b_ref: (L, DP)     per-layer biases, tiled P times along the lanes (resident)
    x0 = x_ref[...].astype(jnp.float32)
    x = x0
    num_layers = m_ref.shape[0]
    for l in range(num_layers):                      # static unroll over layers
        # s[r, j*D + e] = sum_d x[r, j*D + d] * w_l[d]   (dot + lane-broadcast on the MXU)
        s = jnp.dot(x, m_ref[l],
                    preferred_element_type=jnp.float32,
                    precision=jax.lax.Precision.HIGHEST)
        # keep all operands 2-D (sublane-0 rows); no 1-D relayout/broadcast per layer
        x = x0 * s + b_ref[l:l + 1, :] + x
    o_ref[...] = x.astype(o_ref.dtype)


@functools.partial(jax.jit, static_argnames=("batch_tile",))
def cross_network(x, weights, biases, *, batch_tile=2048):
    """x: (B, D); weights/biases: (L, D) -> (B, D)."""
    B, D = x.shape
    L = weights.shape[0]

    # Lane packing: fold P batch rows into one 128-lane row when D divides 128.
    P = 128 // D if (D <= 128 and 128 % D == 0) else 1
    DP = P * D

    # Packed-row tile size: multiple of 8 sublanes, target `batch_tile` original rows.
    # (For very large B this keeps grid >= 2 so v7x's two TensorCores both get work.)
    tile_rows = max(8, _round_up(max(1, batch_tile // P), 8))
    rows = pl.cdiv(B, P)
    if rows <= tile_rows:
        tile_rows = _round_up(rows, 8)
    rows_padded = _round_up(rows, tile_rows)
    b_padded = rows_padded * P

    xp = x
    if b_padded != B:
        xp = jnp.pad(x, ((0, b_padded - B), (0, 0)))     # zero-pad; sliced off below
    xp = xp.reshape(rows_padded, DP)

    wf = weights.astype(jnp.float32)
    bf = biases.astype(jnp.float32)
    # M_l = kron(I_P, outer(w_l, ones_D)) : (L, DP, DP)
    outer = wf[:, :, None] * jnp.ones((1, 1, D), jnp.float32)                  # (L, D, D)
    eye_p = jnp.eye(P, dtype=jnp.float32)
    m = (eye_p[None, :, None, :, None] * outer[:, None, :, None, :]).reshape(L, DP, DP)
    b_packed = jnp.tile(bf, (1, P))                                            # (L, DP)

    # VMEM/step: 2 (dbl-buf) * 2 (in+out) * tile_rows*DP*4B + resident (L,DP,DP)+(L,DP).
    # For D=32, tile_rows=512 that is ~1.2 MiB -> fine for v5e/v6e/v7x default limits.
    grid = (rows_padded // tile_rows,)
    out = pl.pallas_call(
        cross_network_kernel,
        out_shape=jax.ShapeDtypeStruct((rows_padded, DP), x.dtype),
        grid_spec=pltpu.PrefetchScalarGridSpec(
            num_scalar_prefetch=0,
            grid=grid,
            in_specs=[
                pl.BlockSpec((tile_rows, DP), lambda i: (i, 0)),    # packed x tile
                pl.BlockSpec((L, DP, DP), lambda i: (0, 0, 0)),     # resident matrices
                pl.BlockSpec((L, DP), lambda i: (0, 0)),            # resident biases
            ],
            out_specs=pl.BlockSpec((tile_rows, DP), lambda i: (i, 0)),
        ),
        compiler_params=pltpu.CompilerParams(
            dimension_semantics=("parallel",),   # batch tiles independent -> megacore shard
        ),
    )(xp, m, b_packed)

    out = out.reshape(b_padded, D)[:B]
    # TODO(synk): PyTorch's x.squeeze() returns shape (D,) when B == 1; we always return (B, D).
    return out


def cross_network_ref(x, weights, biases):
    """Pure-JAX reference mirroring the PyTorch forward exactly."""
    hp = jax.lax.Precision.HIGHEST
    x0 = x[:, :, None]                          # (B, D, 1)
    xc = x0
    for l in range(weights.shape[0]):
        w = weights[l][:, None]                 # (D, 1)
        b = biases[l][:, None]                  # (D, 1)
        xt = jnp.transpose(xc, (0, 2, 1))       # (B, 1, D)
        xc = jnp.matmul(jnp.matmul(x0, xt, precision=hp), w, precision=hp) + b + xc
    return jnp.squeeze(xc, axis=2)


if __name__ == "__main__":
    layer_num = 3
    input_dim = 32
    batch = 16

    key = jax.random.PRNGKey(0)
    kx, kw, kb = jax.random.split(key, 3)
    x = jax.random.normal(kx, (batch, input_dim), dtype=jnp.float32)
    # nn.Parameter(torch.randn(input_dim, 1)) per layer -> stacked (L, D)
    weights = jax.random.normal(kw, (layer_num, input_dim), dtype=jnp.float32)
    biases = jax.random.normal(kb, (layer_num, input_dim), dtype=jnp.float32)

    out = jax.block_until_ready(cross_network(x, weights, biases))
    ref = cross_network_ref(x, weights, biases)
    assert out.shape == (batch, input_dim)
    assert jnp.allclose(out, ref, rtol=1e-3, atol=1e-3), "mismatch vs reference"

    # Also exercise the padded, multi-tile grid path (grid > 1, non-divisible batch).
    x2 = jax.random.normal(jax.random.PRNGKey(1), (70, input_dim), dtype=jnp.float32)
    out2 = jax.block_until_ready(cross_network(x2, weights, biases, batch_tile=32))
    ref2 = cross_network_ref(x2, weights, biases)
    assert out2.shape == (70, input_dim)
    assert jnp.allclose(out2, ref2, rtol=1e-3, atol=1e-3), "mismatch vs reference (tiled)"

    print("KERNEL_OK")
</pallas_src>

<mosaic_0001>
module attributes {stable_mosaic.version = 11 : i64} {
  func.func @cross_network_kernel(%arg0: i32, %arg1: memref<8x128xf32, #tpu.memory_space<vmem>>, %arg2: memref<3x128x128xf32, #tpu.memory_space<vmem>>, %arg3: memref<3x128xf32, #tpu.memory_space<vmem>>, %arg4: memref<8x128xf32, #tpu.memory_space<vmem>>) attributes {dimension_semantics = [#tpu.dimension_semantics<parallel>], iteration_bounds = array<i64: 1>, scalar_prefetch = 0 : i64, scratch_operands = 0 : i64, tpu.core_type = #tpu.core_type<tc>, window_params = [{transform_indices = @transform_0, window_bounds = array<i64: 8, 128>}, {pipeline_mode = #tpu.pipeline_mode<synchronous>, transform_indices = @transform_1, window_bounds = array<i64: 3, 128, 128>}, {pipeline_mode = #tpu.pipeline_mode<synchronous>, transform_indices = @transform_2, window_bounds = array<i64: 3, 128>}, {transform_indices = @transform_3, window_bounds = array<i64: 8, 128>}]} {
    %c0 = arith.constant 0 : index
    %c0_0 = arith.constant 0 : index
    %0 = vector.load %arg1[%c0, %c0_0] : memref<8x128xf32, #tpu.memory_space<vmem>>, vector<8x128xf32>
    %c0_1 = arith.constant 0 : index
    %c0_2 = arith.constant 0 : index
    %c0_3 = arith.constant 0 : index
    %1 = vector.load %arg2[%c0_1, %c0_2, %c0_3] : memref<3x128x128xf32, #tpu.memory_space<vmem>>, vector<1x128x128xf32>
    %2 = vector.shape_cast %1 : vector<1x128x128xf32> to vector<128x128xf32>
    %cst = arith.constant dense<0.000000e+00> : vector<8x128xf32>
    %3 = tpu.matmul %0, %2, %cst {dimension_numbers = #tpu.dot_dimension_numbers<[1], [0], [0], [1], [0, 0, 1, 1], [], []>, precision = #tpu.contract_precision<fp32>} : vector<8x128xf32>, vector<128x128xf32>, vector<8x128xf32> -> vector<8x128xf32>
    %4 = arith.mulf %0, %3 : vector<8x128xf32>
    %c0_4 = arith.constant 0 : index
    %c0_5 = arith.constant 0 : index
    %5 = vector.load %arg3[%c0_4, %c0_5] : memref<3x128xf32, #tpu.memory_space<vmem>>, vector<1x128xf32>
    %6 = vector.broadcast %5 : vector<1x128xf32> to vector<8x128xf32>
    %7 = arith.addf %4, %6 : vector<8x128xf32>
    %8 = arith.addf %7, %0 : vector<8x128xf32>
    %c1 = arith.constant 1 : index
    %c0_6 = arith.constant 0 : index
    %c0_7 = arith.constant 0 : index
    %9 = vector.load %arg2[%c1, %c0_6, %c0_7] : memref<3x128x128xf32, #tpu.memory_space<vmem>>, vector<1x128x128xf32>
    %10 = vector.shape_cast %9 : vector<1x128x128xf32> to vector<128x128xf32>
    %cst_8 = arith.constant dense<0.000000e+00> : vector<8x128xf32>
    %11 = tpu.matmul %8, %10, %cst_8 {dimension_numbers = #tpu.dot_dimension_numbers<[1], [0], [0], [1], [0, 0, 1, 1], [], []>, precision = #tpu.contract_precision<fp32>} : vector<8x128xf32>, vector<128x128xf32>, vector<8x128xf32> -> vector<8x128xf32>
    %12 = arith.mulf %0, %11 : vector<8x128xf32>
    %c1_9 = arith.constant 1 : index
    %c0_10 = arith.constant 0 : index
    %13 = vector.load %arg3[%c1_9, %c0_10] : memref<3x128xf32, #tpu.memory_space<vmem>>, vector<1x128xf32>
    %14 = vector.broadcast %13 : vector<1x128xf32> to vector<8x128xf32>
    %15 = arith.addf %12, %14 : vector<8x128xf32>
    %16 = arith.addf %15, %8 : vector<8x128xf32>
    %c2 = arith.constant 2 : index
    %c0_11 = arith.constant 0 : index
    %c0_12 = arith.constant 0 : index
    %17 = vector.load %arg2[%c2, %c0_11, %c0_12] : memref<3x128x128xf32, #tpu.memory_space<vmem>>, vector<1x128x128xf32>
    %18 = vector.shape_cast %17 : vector<1x128x128xf32> to vector<128x128xf32>
    %cst_13 = arith.constant dense<0.000000e+00> : vector<8x128xf32>
    %19 = tpu.matmul %16, %18, %cst_13 {dimension_numbers = #tpu.dot_dimension_numbers<[1], [0], [0], [1], [0, 0, 1, 1], [], []>, precision = #tpu.contract_precision<fp32>} : vector<8x128xf32>, vector<128x128xf32>, vector<8x128xf32> -> vector<8x128xf32>
    %20 = arith.mulf %0, %19 : vector<8x128xf32>
    %c2_14 = arith.constant 2 : index
    %c0_15 = arith.constant 0 : index
    %21 = vector.load %arg3[%c2_14, %c0_15] : memref<3x128xf32, #tpu.memory_space<vmem>>, vector<1x128xf32>
    %22 = vector.broadcast %21 : vector<1x128xf32> to vector<8x128xf32>
    %23 = arith.addf %20, %22 : vector<8x128xf32>
    %24 = arith.addf %23, %16 : vector<8x128xf32>
    %c0_16 = arith.constant 0 : index
    %c0_17 = arith.constant 0 : index
    %25 = vector.load %arg4[%c0_16, %c0_17] : memref<8x128xf32, #tpu.memory_space<vmem>>, vector<8x128xf32>
    tpu.vector_store %arg4[%c0_16, %c0_17], %24 {strides = array<i32>} : memref<8x128xf32, #tpu.memory_space<vmem>>, vector<8x128xf32>,
    return
  }
  func.func @transform_0(%arg0: i32) -> (i32, i32) {
    %c0_i32 = arith.constant 0 : i32
    %c0_i32_0 = arith.constant 0 : i32
    return %arg0, %c0_i32 : i32, i32
  }
  func.func @transform_1(%arg0: i32) -> (i32, i32, i32) {
    %c0_i32 = arith.constant 0 : i32
    %c0_i32_0 = arith.constant 0 : i32
    %c0_i32_1 = arith.constant 0 : i32
    %c0_i32_2 = arith.constant 0 : i32
    return %c0_i32, %c0_i32_0, %c0_i32_1 : i32, i32, i32
  }
  func.func @transform_2(%arg0: i32) -> (i32, i32) {
    %c0_i32 = arith.constant 0 : i32
    %c0_i32_0 = arith.constant 0 : i32
    %c0_i32_1 = arith.constant 0 : i32
    return %c0_i32, %c0_i32_0 : i32, i32
  }
  func.func @transform_3(%arg0: i32) -> (i32, i32) {
    %c0_i32 = arith.constant 0 : i32
    %c0_i32_0 = arith.constant 0 : i32
    return %arg0, %c0_i32 : i32, i32
  }
}

</mosaic_0001>

<llo_original>
// kernel: cross_network.1
$region0: #{cross_network.1}
  #allocation0 [shape = 'u32[]', space=smem, size = 0x4, offset = 0x4, fixed_abs, tag = 'smem constant byte address 0x4 - core index']
  #allocation1 [shape = 'u32[144,128]{1,0:T(1,128)}', space=vmem, size = 0x12000, scoped, tag = 'internal scratch']
  %s0 = inlined_call_operand.vmem [shape: f32[8,128], index: 0, kind: input, shape index: {}]
  %s1 = inlined_call_operand.vmem [shape: f32[3,128,128], index: 1, kind: input, shape index: {}]
  %s2 = inlined_call_operand.vmem [shape: f32[3,128], index: 2, kind: input, shape index: {}]
  %s3 = inlined_call_operand.vmem [shape: f32[8,128], index: 3, kind: output, shape index: {}]
  %s4 = sld [smem:[#allocation0]]
  $region22: #{cross_network.1} parent=0
    _
  %s6 = ssub.s32 1, %s4
  %s7 = scalar_select 0, %s6, %s4
  // Predicated region
  $region2: #{cross_network.1} parent=0 // pred_check
    _
  $region3: #{cross_network.1} parent=0 // pred_check_branch
    %9 = sbr.rel (0) target = $region5
  $region4: #{cross_network.1} parent=0 // pred_region
    _
  $region5: #{cross_network.1} parent=0 // pred_fallthru
    _
  // Predicated region
  $region6: #{cross_network.1} parent=0 // pred_check
    _
  $region7: #{cross_network.1} parent=0 // pred_check_branch
    %11 = sbr.rel (0) target = $region9
  $region8: #{cross_network.1} parent=0 // pred_region
    _
  $region9: #{cross_network.1} parent=0 // pred_fallthru
    _
  // Predicated region
  $region10: #{cross_network.1} parent=0 // pred_check
    _
  $region11: #{cross_network.1} parent=0 // pred_check_branch
    %13 = sbr.rel (0) target = $region13
  $region12: #{cross_network.1} parent=0 // pred_region
    _
  $region13: #{cross_network.1} parent=0 // pred_fallthru
    _
  %v14 = vld [vmem:[%s0] sm:$0xff]
  %v15 = vld [vmem:[%s1] sm:$0xff]
  %v16 = vld [vmem:[%s1 + $0x8] sm:$0xff]
  %v17 = vld [vmem:[%s1 + $0x10] sm:$0xff]
  %v18 = vld [vmem:[%s1 + $0x18] sm:$0xff]
  %v19 = vld [vmem:[%s1 + $0x20] sm:$0xff]
  %v20 = vld [vmem:[%s1 + $0x28] sm:$0xff]
  %v21 = vld [vmem:[%s1 + $0x30] sm:$0xff]
  %v22 = vld [vmem:[%s1 + $0x38] sm:$0xff]
  %v23 = vld [vmem:[%s1 + $0x40] sm:$0xff]
  %v24 = vld [vmem:[%s1 + $0x48] sm:$0xff]
  %v25 = vld [vmem:[%s1 + $0x50] sm:$0xff]
  %v26 = vld [vmem:[%s1 + $0x58] sm:$0xff]
  %v27 = vld [vmem:[%s1 + $0x60] sm:$0xff]
  %v28 = vld [vmem:[%s1 + $0x68] sm:$0xff]
  %v29 = vld [vmem:[%s1 + $0x70] sm:$0xff]
  %v30 = vld [vmem:[%s1 + $0x78] sm:$0xff]
  %31 = vmatprep.subr.mxu0 0.0
  %v32 = vand.u32 %v15, 4294901760
  %33 = vmatpush1.msra.mxu0 %v32
  %34 = vmatprep.subr.mxu0 0.0
  %v35 = vand.u32 %v16, 4294901760
  %36 = vmatpush1.msra.mxu0 %v35
  %37 = vmatprep.subr.mxu0 0.0
  %v38 = vand.u32 %v17, 4294901760
  %39 = vmatpush1.msra.mxu0 %v38
  %40 = vmatprep.subr.mxu0 0.0
  %v41 = vand.u32 %v18, 4294901760
  %42 = vmatpush1.msra.mxu0 %v41
  %43 = vmatprep.subr.mxu0 0.0
  %v44 = vand.u32 %v19, 4294901760
  %45 = vmatpush1.msra.mxu0 %v44
  %46 = vmatprep.subr.mxu0 0.0
  %v47 = vand.u32 %v20, 4294901760
  %48 = vmatpush1.msra.mxu0 %v47
  %49 = vmatprep.subr.mxu0 0.0
  %v50 = vand.u32 %v21, 4294901760
  %51 = vmatpush1.msra.mxu0 %v50
  %52 = vmatprep.subr.mxu0 0.0
  %v53 = vand.u32 %v22, 4294901760
  %54 = vmatpush1.msra.mxu0 %v53
  %55 = vmatprep.subr.mxu0 0.0
  %v56 = vand.u32 %v23, 4294901760
  %57 = vmatpush1.msra.mxu0 %v56
  %58 = vmatprep.subr.mxu0 0.0
  %v59 = vand.u32 %v24, 4294901760
  %60 = vmatpush1.msra.mxu0 %v59
  %61 = vmatprep.subr.mxu0 0.0
  %v62 = vand.u32 %v25, 4294901760
  %63 = vmatpush1.msra.mxu0 %v62
  %64 = vmatprep.subr.mxu0 0.0
  %v65 = vand.u32 %v26, 4294901760
  %66 = vmatpush1.msra.mxu0 %v65
  %67 = vmatprep.subr.mxu0 0.0
  %v68 = vand.u32 %v27, 4294901760
  %69 = vmatpush1.msra.mxu0 %v68
  %70 = vmatprep.subr.mxu0 0.0
  %v71 = vand.u32 %v28, 4294901760
  %72 = vmatpush1.msra.mxu0 %v71
  %73 = vmatprep.subr.mxu0 0.0
  %v74 = vand.u32 %v29, 4294901760
  %75 = vmatpush1.msra.mxu0 %v74
  %76 = vmatprep.subr.mxu0 0.0
  %v77 = vand.u32 %v30, 4294901760
  %78 = vmatpush1.msra.mxu0 %v77
  %79 = vmatprep.subr.mxu0 0.0
  %80 = vmatpush1.msra.mxu0 0.0
  %81 = vmatprep.subr.mxu0 0.0
  %82 = vmatpush1.msra.mxu0 0.0
  %83 = vmatprep.subr.mxu0 0.0
  %84 = vmatpush1.msra.mxu0 0.0
  %85 = vmatprep.subr.mxu0 0.0
  %86 = vmatpush1.msra.mxu0 0.0
  %87 = vmatprep.subr.mxu0 0.0
  %88 = vmatpush1.msra.mxu0 0.0
  %89 = vmatprep.subr.mxu0 0.0
  %90 = vmatpush1.msra.mxu0 0.0
  %91 = vmatprep.subr.mxu0 0.0
  %92 = vmatpush1.msra.mxu0 0.0
  %93 = vmatprep.subr.mxu0 0.0
  %94 = vmatpush1.msra.mxu0 0.0
  %95 = vmatprep.subr.mxu0 0.0
  %96 = vmatpush1.msra.mxu0 0.0
  %97 = vmatprep.subr.mxu0 0.0
  %98 = vmatpush1.msra.mxu0 0.0
  %99 = vmatprep.subr.mxu0 0.0
  %100 = vmatpush1.msra.mxu0 0.0
  %101 = vmatprep.subr.mxu0 0.0
  %102 = vmatpush1.msra.mxu0 0.0
  %103 = vmatprep.subr.mxu0 0.0
  %104 = vmatpush1.msra.mxu0 0.0
  %105 = vmatprep.subr.mxu0 0.0
  %106 = vmatpush1.msra.mxu0 0.0
  %107 = vmatprep.subr.mxu0 0.0
  %108 = vmatpush1.msra.mxu0 0.0
  %109 = vmatprep.subr.mxu0 0.0
  %110 = vmatpush1.msra.mxu0 0.0
  %111 = vmatprep.mubr.f32.mxu0 0.0
  %v112 = vand.u32 %v14, 4294901760
  %v113 = vsub.f32 %v14, %v112
  %v114 = vand.u32 %v113, 4294901760
  %v115 = vsub.f32 %v113, %v114
  %v116 = vand.u32 %v115, 4294901760
  %117 = vmatmul.mubr.f32.gmra.mrb[0].mxu0 %v116
  %v118 = vpop.f32.mrb[0].mxu0
  %v119 = vadd.f32 0.0, %v118
  %v120 = vpop.f32.mrb[0].mxu0
  %121 = vdwg.mxu0
  %122 = vmatprep.subr.mxu0 0.0
  %v123 = vand.u32 %v15, 4294901760
  %v124 = vsub.f32 %v15, %v123
  %v125 = vand.u32 %v124, 4294901760
  %v126 = vsub.f32 %v124, %v125
  %v127 = vand.u32 %v126, 4294901760
  %128 = vmatpush1.msra.mxu0 %v127
  %129 = vmatprep.subr.mxu0 0.0
  %v130 = vand.u32 %v16, 4294901760
  %v131 = vsub.f32 %v16, %v130
  %v132 = vand.u32 %v131, 4294901760
  %v133 = vsub.f32 %v131, %v132
  %v134 = vand.u32 %v133, 4294901760
  %135 = vmatpush1.msra.mxu0 %v134
  %136 = vmatprep.subr.mxu0 0.0
  %v137 = vand.u32 %v17, 4294901760
  %v138 = vsub.f32 %v17, %v137
  %v139 = vand.u32 %v138, 4294901760
  %v140 = vsub.f32 %v138, %v139
  %v141 = vand.u32 %v140, 4294901760
  %142 = vmatpush1.msra.mxu0 %v141
  %143 = vmatprep.subr.mxu0 0.0
  %v144 = vand.u32 %v18, 4294901760
  %v145 = vsub.f32 %v18, %v144
  %v146 = vand.u32 %v145, 4294901760
  %v147 = vsub.f32 %v145, %v146
  %v148 = vand.u32 %v147, 4294901760
  %149 = vmatpush1.msra.mxu0 %v148
  %150 = vmatprep.subr.mxu0 0.0
  %v151 = vand.u32 %v19, 4294901760
  %v152 = vsub.f32 %v19, %v151
  %v153 = vand.u32 %v152, 4294901760
  %v154 = vsub.f32 %v152, %v153
  %v155 = vand.u32 %v154, 4294901760
  %156 = vmatpush1.msra.mxu0 %v155
  %157 = vmatprep.subr.mxu0 0.0
  %v158 = vand.u32 %v20, 4294901760
  %v159 = vsub.f32 %v20, %v158
  %v160 = vand.u32 %v159, 4294901760
  %v161 = vsub.f32 %v159, %v160
  %v162 = vand.u32 %v161, 4294901760
  %163 = vmatpush1.msra.mxu0 %v162
  %164 = vmatprep.subr.mxu0 0.0
  %v165 = vand.u32 %v21, 4294901760
  %v166 = vsub.f32 %v21, %v165
  %v167 = vand.u32 %v166, 4294901760
  %v168 = vsub.f32 %v166, %v167
  %v169 = vand.u32 %v168, 4294901760
  %170 = vmatpush1.msra.mxu0 %v169
  %171 = vmatprep.subr.mxu0 0.0
  %v172 = vand.u32 %v22, 4294901760
  %v173 = vsub.f32 %v22, %v172
  %v174 = vand.u32 %v173, 4294901760
  %v175 = vsub.f32 %v173, %v174
  %v176 = vand.u32 %v175, 4294901760
  %177 = vmatpush1.msra.mxu0 %v176
  %178 = vmatprep.subr.mxu0 0.0
  %v179 = vand.u32 %v23, 4294901760
  %v180 = vsub.f32 %v23, %v179
  %v181 = vand.u32 %v180, 4294901760
  %v182 = vsub.f32 %v180, %v181
  %v183 = vand.u32 %v182, 4294901760
  %184 = vmatpush1.msra.mxu0 %v183
  %185 = vmatprep.subr.mxu0 0.0
  %v186 = vand.u32 %v24, 4294901760
  %v187 = vsub.f32 %v24, %v186
  %v188 = vand.u32 %v187, 4294901760
  %v189 = vsub.f32 %v187, %v188
  %v190 = vand.u32 %v189, 4294901760
  %191 = vmatpush1.msra.mxu0 %v190
  %192 = vmatprep.subr.mxu0 0.0
  %v193 = vand.u32 %v25, 4294901760
  %v194 = vsub.f32 %v25, %v193
  %v195 = vand.u32 %v194, 4294901760
  %v196 = vsub.f32 %v194, %v195
  %v197 = vand.u32 %v196, 4294901760
  %198 = vmatpush1.msra.mxu0 %v197
  %199 = vmatprep.subr.mxu0 0.0
  %v200 = vand.u32 %v26, 4294901760
  %v201 = vsub.f32 %v26, %v200
  %v202 = vand.u32 %v201, 4294901760
  %v203 = vsub.f32 %v201, %v202
  %v204 = vand.u32 %v203, 4294901760
  %205 = vmatpush1.msra.mxu0 %v204
  %206 = vmatprep.subr.mxu0 0.0
  %v207 = vand.u32 %v27, 4294901760
  %v208 = vsub.f32 %v27, %v207
  %v209 = vand.u32 %v208, 4294901760
  %v210 = vsub.f32 %v208, %v209
  %v211 = vand.u32 %v210, 4294901760
  %212 = vmatpush1.msra.mxu0 %v211
  %213 = vmatprep.subr.mxu0 0.0
  %v214 = vand.u32 %v28, 4294901760
  %v215 = vsub.f32 %v28, %v214
  %v216 = vand.u32 %v215, 4294901760
  %v217 = vsub.f32 %v215, %v216
  %v218 = vand.u32 %v217, 4294901760
  %219 = vmatpush1.msra.mxu0 %v218
  %220 = vmatprep.subr.mxu0 0.0
  %v221 = vand.u32 %v29, 4294901760
  %v222 = vsub.f32 %v29, %v221
  %v223 = vand.u32 %v222, 4294901760
  %v224 = vsub.f32 %v222, %v223
  %v225 = vand.u32 %v224, 4294901760
  %226 = vmatpush1.msra.mxu0 %v225
  %227 = vmatprep.subr.mxu0 0.0
  %v228 = vand.u32 %v30, 4294901760
  %v229 = vsub.f32 %v30, %v228
  %v230 = vand.u32 %v229, 4294901760
  %v231 = vsub.f32 %v229, %v230
  %v232 = vand.u32 %v231, 4294901760
  %233 = vmatpush1.msra.mxu0 %v232
  %234 = vmatprep.subr.mxu0 0.0
  %235 = vmatpush1.msra.mxu0 0.0
  %236 = vmatprep.subr.mxu0 0.0
  %237 = vmatpush1.msra.mxu0 0.0
  %238 = vmatprep.subr.mxu0 0.0
  %239 = vmatpush1.msra.mxu0 0.0
  %240 = vmatprep.subr.mxu0 0.0
  %241 = vmatpush1.msra.mxu0 0.0
  %242 = vmatprep.subr.mxu0 0.0
  %243 = vmatpush1.msra.mxu0 0.0
  %244 = vmatprep.subr.mxu0 0.0
  %245 = vmatpush1.msra.mxu0 0.0
  %246 = vmatprep.subr.mxu0 0.0
  %247 = vmatpush1.msra.mxu0 0.0
  %248 = vmatprep.subr.mxu0 0.0
  %249 = vmatpush1.msra.mxu0 0.0
  %250 = vmatprep.subr.mxu0 0.0
  %251 = vmatpush1.msra.mxu0 0.0
  %252 = vmatprep.subr.mxu0 0.0
  %253 = vmatpush1.msra.mxu0 0.0
  %254 = vmatprep.subr.mxu0 0.0
  %255 = vmatpush1.msra.mxu0 0.0
  %256 = vmatprep.subr.mxu0 0.0
  %257 = vmatpush1.msra.mxu0 0.0
  %258 = vmatprep.subr.mxu0 0.0
  %259 = vmatpush1.msra.mxu0 0.0
  %260 = vmatprep.subr.mxu0 0.0
  %261 = vmatpush1.msra.mxu0 0.0
  %262 = vmatprep.subr.mxu0 0.0
  %263 = vmatpush1.msra.mxu0 0.0
  %264 = vmatprep.subr.mxu0 0.0
  %265 = vmatpush1.msra.mxu0 0.0
  %266 = vmatprep.mubr.f32.mxu0 0.0
  %v267 = vand.u32 %v14, 4294901760
  %268 = vmatmul.mubr.f32.gmra.mrb[0].mxu0 %v267
  %v269 = vpop.f32.mrb[0].mxu0
  %v270 = vadd.f32 %v119, %v269
  %v271 = vpop.f32.mrb[0].mxu0
  %272 = vdwg.mxu0
  %273 = vmatprep.subr.mxu0 0.0
  %v274 = vand.u32 %v15, 4294901760
  %v275 = vsub.f32 %v15, %v274
  %276 = vmatpush1.msra.mxu0 %v275
  %277 = vmatprep.subr.mxu0 0.0
  %v278 = vand.u32 %v16, 4294901760
  %v279 = vsub.f32 %v16, %v278
  %280 = vmatpush1.msra.mxu0 %v279
  %281 = vmatprep.subr.mxu0 0.0
  %v282 = vand.u32 %v17, 4294901760
  %v283 = vsub.f32 %v17, %v282
  %284 = vmatpush1.msra.mxu0 %v283
  %285 = vmatprep.subr.mxu0 0.0
  %v286 = vand.u32 %v18, 4294901760
  %v287 = vsub.f32 %v18, %v286
  %288 = vmatpush1.msra.mxu0 %v287
  %289 = vmatprep.subr.mxu0 0.0
  %v290 = vand.u32 %v19, 4294901760
  %v291 = vsub.f32 %v19, %v290
  %292 = vmatpush1.msra.mxu0 %v291
  %293 = vmatprep.subr.mxu0 0.0
  %v294 = vand.u32 %v20, 4294901760
  %v295 = vsub.f32 %v20, %v294
  %296 = vmatpush1.msra.mxu0 %v295
  %297 = vmatprep.subr.mxu0 0.0
  %v298 = vand.u32 %v21, 4294901760
  %v299 = vsub.f32 %v21, %v298
  %300 = vmatpush1.msra.mxu0 %v299
  %301 = vmatprep.subr.mxu0 0.0
  %v302 = vand.u32 %v22, 4294901760
  %v303 = vsub.f32 %v22, %v302
  %304 = vmatpush1.msra.mxu0 %v303
  %305 = vmatprep.subr.mxu0 0.0
  %v306 = vand.u32 %v23, 4294901760
  %v307 = vsub.f32 %v23, %v306
  %308 = vmatpush1.msra.mxu0 %v307
  %309 = vmatprep.subr.mxu0 0.0
  %v310 = vand.u32 %v24, 4294901760
  %v311 = vsub.f32 %v24, %v310
  %312 = vmatpush1.msra.mxu0 %v311
  %313 = vmatprep.subr.mxu0 0.0
  %v314 = vand.u32 %v25, 4294901760
  %v315 = vsub.f32 %v25, %v314
  %316 = vmatpush1.msra.mxu0 %v315
  %317 = vmatprep.subr.mxu0 0.0
  %v318 = vand.u32 %v26, 4294901760
  %v319 = vsub.f32 %v26, %v318
  %320 = vmatpush1.msra.mxu0 %v319
  %321 = vmatprep.subr.mxu0 0.0
  %v322 = vand.u32 %v27, 4294901760
  %v323 = vsub.f32 %v27, %v322
  %324 = vmatpush1.msra.mxu0 %v323
  %325 = vmatprep.subr.mxu0 0.0
  %v326 = vand.u32 %v28, 4294901760
  %v327 = vsub.f32 %v28, %v326
  %328 = vmatpush1.msra.mxu0 %v327
  %329 = vmatprep.subr.mxu0 0.0
  %v330 = vand.u32 %v29, 4294901760
  %v331 = vsub.f32 %v29, %v330
  %332 = vmatpush1.msra.mxu0 %v331
  %333 = vmatprep.subr.mxu0 0.0
  %v334 = vand.u32 %v30, 4294901760
  %v335 = vsub.f32 %v30, %v334
  %336 = vmatpush1.msra.mxu0 %v335
  %337 = vmatprep.subr.mxu0 0.0
  %338 = vmatpush1.msra.mxu0 0.0
  %339 = vmatprep.subr.mxu0 0.0
  %340 = vmatpush1.msra.mxu0 0.0
  %341 = vmatprep.subr.mxu0 0.0
  %342 = vmatpush1.msra.mxu0 0.0
  %343 = vmatprep.subr.mxu0 0.0
  %344 = vmatpush1.msra.mxu0 0.0
  %345 = vmatprep.subr.mxu0 0.0
  %346 = vmatpush1.msra.mxu0 0.0
  %347 = vmatprep.subr.mxu0 0.0
  %348 = vmatpush1.msra.mxu0 0.0
  %349 = vmatprep.subr.mxu0 0.0
  %350 = vmatpush1.msra.mxu0 0.0
  %351 = vmatprep.subr.mxu0 0.0
  %352 = vmatpush1.msra.mxu0 0.0
  %353 = vmatprep.subr.mxu0 0.0
  %354 = vmatpush1.msra.mxu0 0.0
  %355 = vmatprep.subr.mxu0 0.0
  %356 = vmatpush1.msra.mxu0 0.0
  %357 = vmatprep.subr.mxu0 0.0
  %358 = vmatpush1.msra.mxu0 0.0
  %359 = vmatprep.subr.mxu0 0.0
  %360 = vmatpush1.msra.mxu0 0.0
  %361 = vmatprep.subr.mxu0 0.0
  %362 = vmatpush1.msra.mxu0 0.0
  %363 = vmatprep.subr.mxu0 0.0
  %364 = vmatpush1.msra.mxu0 0.0
  %365 = vmatprep.subr.mxu0 0.0
  %366 = vmatpush1.msra.mxu0 0.0
  %367 = vmatprep.subr.mxu0 0.0
  %368 = vmatpush1.msra.mxu0 0.0
  %369 = vmatprep.mubr.f32.mxu0 0.0
  %v370 = vand.u32 %v14, 4294901760
  %v371 = vsub.f32 %v14, %v370
  %372 = vmatmul.mubr.f32.gmra.mrb[0].mxu0 %v371
  %v373 = vpop.f32.mrb[0].mxu0
  %v374 = vadd.f32 %v270, %v373
  %v375 = vpop.f32.mrb[0].mxu0
  %376 = vdwg.mxu0
  %377 = vmatprep.subr.mxu0 0.0
  %v378 = vand.u32 %v15, 4294901760
  %379 = vmatpush1.msra.mxu0 %v378
  %380 = vmatprep.subr.mxu0 0.0
  %v381 = vand.u32 %v16, 4294901760
  %382 = vmatpush1.msra.mxu0 %v381
  %383 = vmatprep.subr.mxu0 0.0
  %v384 = vand.u32 %v17, 4294901760
  %385 = vmatpush1.msra.mxu0 %v384
  %386 = vmatprep.subr.mxu0 0.0
  %v387 = vand.u32 %v18, 4294901760
  %388 = vmatpush1.msra.mxu0 %v387
  %389 = vmatprep.subr.mxu0 0.0
  %v390 = vand.u32 %v19, 4294901760
  %391 = vmatpush1.msra.mxu0 %v390
  %392 = vmatprep.subr.mxu0 0.0
  %v393 = vand.u32 %v20, 4294901760
  %394 = vmatpush1.msra.mxu0 %v393
  %395 = vmatprep.subr.mxu0 0.0
  %v396 = vand.u32 %v21, 4294901760
  %397 = vmatpush1.msra.mxu0 %v396
  %398 = vmatprep.subr.mxu0 0.0
  %v399 = vand.u32 %v22, 4294901760
  %400 = vmatpush1.msra.mxu0 %v399
  %401 = vmatprep.subr.mxu0 0.0
  %v402 = vand.u32 %v23, 4294901760
  %403 = vmatpush1.msra.mxu0 %v402
  %404 = vmatprep.subr.mxu0 0.0
  %v405 = vand.u32 %v24, 4294901760
  %406 = vmatpush1.msra.mxu0 %v405
  %407 = vmatprep.subr.mxu0 0.0
  %v408 = vand.u32 %v25, 4294901760
  %409 = vmatpush1.msra.mxu0 %v408
  %410 = vmatprep.subr.mxu0 0.0
  %v411 = vand.u32 %v26, 4294901760
  %412 = vmatpush1.msra.mxu0 %v411
  %413 = vmatprep.subr.mxu0 0.0
  %v414 = vand.u32 %v27, 4294901760
  %415 = vmatpush1.msra.mxu0 %v414
  %416 = vmatprep.subr.mxu0 0.0
  %v417 = vand.u32 %v28, 4294901760
  %418 = vmatpush1.msra.mxu0 %v417
  %419 = vmatprep.subr.mxu0 0.0
  %v420 = vand.u32 %v29, 4294901760
  %421 = vmatpush1.msra.mxu0 %v420
  %422 = vmatprep.subr.mxu0 0.0
  %v423 = vand.u32 %v30, 4294901760
  %424 = vmatpush1.msra.mxu0 %v423
  %425 = vmatprep.subr.mxu0 0.0
  %426 = vmatpush1.msra.mxu0 0.0
  %427 = vmatprep.subr.mxu0 0.0
  %428 = vmatpush1.msra.mxu0 0.0
  %429 = vmatprep.subr.mxu0 0.0
  %430 = vmatpush1.msra.mxu0 0.0
  %431 = vmatprep.subr.mxu0 0.0
  %432 = vmatpush1.msra.mxu0 0.0
  %433 = vmatprep.subr.mxu0 0.0
  %434 = vmatpush1.msra.mxu0 0.0
  %435 = vmatprep.subr.mxu0 0.0
  %436 = vmatpush1.msra.mxu0 0.0
  %437 = vmatprep.subr.mxu0 0.0
  %438 = vmatpush1.msra.mxu0 0.0
  %439 = vmatprep.subr.mxu0 0.0
  %440 = vmatpush1.msra.mxu0 0.0
  %441 = vmatprep.subr.mxu0 0.0
  %442 = vmatpush1.msra.mxu0 0.0
  %443 = vmatprep.subr.mxu0 0.0
  %444 = vmatpush1.msra.mxu0 0.0
  %445 = vmatprep.subr.mxu0 0.0
  %446 = vmatpush1.msra.mxu0 0.0
  %447 = vmatprep.subr.mxu0 0.0
  %448 = vmatpush1.msra.mxu0 0.0
  %449 = vmatprep.subr.mxu0 0.0
  %450 = vmatpush1.msra.mxu0 0.0
  %451 = vmatprep.subr.mxu0 0.0
  %452 = vmatpush1.msra.mxu0 0.0
  %453 = vmatprep.subr.mxu0 0.0
  %454 = vmatpush1.msra.mxu0 0.0
  %455 = vmatprep.subr.mxu0 0.0
  %456 = vmatpush1.msra.mxu0 0.0
  %457 = vmatprep.mubr.f32.mxu0 0.0
  %v458 = vand.u32 %v14, 4294901760
  %v459 = vsub.f32 %v14, %v458
  %v460 = vand.u32 %v459, 4294901760
  %461 = vmatmul.mubr.f32.gmra.mrb[0].mxu0 %v460
  %v462 = vpop.f32.mrb[0].mxu0
  %v463 = vadd.f32 %v374, %v462
  %v464 = vpop.f32.mrb[0].mxu0
  %465 = vdwg.mxu0
  %466 = vmatprep.subr.mxu0 0.0
  %v467 = vand.u32 %v15, 4294901760
  %v468 = vsub.f32 %v15, %v467
  %v469 = vand.u32 %v468, 4294901760
  %470 = vmatpush1.msra.mxu0 %v469
  %471 = vmatprep.subr.mxu0 0.0
  %v472 = vand.u32 %v16, 4294901760
  %v473 = vsub.f32 %v16, %v472
  %v474 = vand.u32 %v473, 4294901760
  %475 = vmatpush1.msra.mxu0 %v474
  %476 = vmatprep.subr.mxu0 0.0
  %v477 = vand.u32 %v17, 4294901760
  %v478 = vsub.f32 %v17, %v477
  %v479 = vand.u32 %v478, 4294901760
  %480 = vmatpush1.msra.mxu0 %v479
  %481 = vmatprep.subr.mxu0 0.0
  %v482 = vand.u32 %v18, 4294901760
  %v483 = vsub.f32 %v18, %v482
  %v484 = vand.u32 %v483, 4294901760
  %485 = vmatpush1.msra.mxu0 %v484
  %486 = vmatprep.subr.mxu0 0.0
  %v487 = vand.u32 %v19, 4294901760
  %v488 = vsub.f32 %v19, %v487
  %v489 = vand.u32 %v488, 4294901760
  %490 = vmatpush1.msra.mxu0 %v489
  %491 = vmatprep.subr.mxu0 0.0
  %v492 = vand.u32 %v20, 4294901760
  %v493 = vsub.f32 %v20, %v492
  %v494 = vand.u32 %v493, 4294901760
  %495 = vmatpush1.msra.mxu0 %v494
  %496 = vmatprep.subr.mxu0 0.0
  %v497 = vand.u32 %v21, 4294901760
  %v498 = vsub.f32 %v21, %v497
  %v499 = vand.u32 %v498, 4294901760
  %500 = vmatpush1.msra.mxu0 %v499
  %501 = vmatprep.subr.mxu0 0.0
  %v502 = vand.u32 %v22, 4294901760
  %v503 = vsub.f32 %v22, %v502
  %v504 = vand.u32 %v503, 4294901760
  %505 = vmatpush1.msra.mxu0 %v504
  %506 = vmatprep.subr.mxu0 0.0
  %v507 = vand.u32 %v23, 4294901760
  %v508 = vsub.f32 %v23, %v507
  %v509 = vand.u32 %v508, 4294901760
  %510 = vmatpush1.msra.mxu0 %v509
  %511 = vmatprep.subr.mxu0 0.0
  %v512 = vand.u32 %v24, 4294901760
  %v513 = vsub.f32 %v24, %v512
  %v514 = vand.u32 %v513, 4294901760
  %515 = vmatpush1.msra.mxu0 %v514
  %516 = vmatprep.subr.mxu0 0.0
  %v517 = vand.u32 %v25, 4294901760
  %v518 = vsub.f32 %v25, %v517
  %v519 = vand.u32 %v518, 4294901760
  %520 = vmatpush1.msra.mxu0 %v519
  %521 = vmatprep.subr.mxu0 0.0
  %v522 = vand.u32 %v26, 4294901760
  %v523 = vsub.f32 %v26, %v522
  %v524 = vand.u32 %v523, 4294901760
  %525 = vmatpush1.msra.mxu0 %v524
  %526 = vmatprep.subr.mxu0 0.0
  %v527 = vand.u32 %v27, 4294901760
  %v528 = vsub.f32 %v27, %v527
  %v529 = vand.u32 %v528, 4294901760
  %530 = vmatpush1.msra.mxu0 %v529
  %531 = vmatprep.subr.mxu0 0.0
  %v532 = vand.u32 %v28, 4294901760
  %v533 = vsub.f32 %v28, %v532
  %v534 = vand.u32 %v533, 4294901760
  %535 = vmatpush1.msra.mxu0 %v534
  %536 = vmatprep.subr.mxu0 0.0
  %v537 = vand.u32 %v29, 4294901760
  %v538 = vsub.f32 %v29, %v537
  %v539 = vand.u32 %v538, 4294901760
  %540 = vmatpush1.msra.mxu0 %v539
  %541 = vmatprep.subr.mxu0 0.0
  %v542 = vand.u32 %v30, 4294901760
  %v543 = vsub.f32 %v30, %v542
  %v544 = vand.u32 %v543, 4294901760
  %545 = vmatpush1.msra.mxu0 %v544
  %546 = vmatprep.subr.mxu0 0.0
  %547 = vmatpush1.msra.mxu0 0.0
  %548 = vmatprep.subr.mxu0 0.0
  %549 = vmatpush1.msra.mxu0 0.0
  %550 = vmatprep.subr.mxu0 0.0
  %551 = vmatpush1.msra.mxu0 0.0
  %552 = vmatprep.subr.mxu0 0.0
  %553 = vmatpush1.msra.mxu0 0.0
  %554 = vmatprep.subr.mxu0 0.0
  %555 = vmatpush1.msra.mxu0 0.0
  %556 = vmatprep.subr.mxu0 0.0
  %557 = vmatpush1.msra.mxu0 0.0
  %558 = vmatprep.subr.mxu0 0.0
  %559 = vmatpush1.msra.mxu0 0.0
  %560 = vmatprep.subr.mxu0 0.0
  %561 = vmatpush1.msra.mxu0 0.0
  %562 = vmatprep.subr.mxu0 0.0
  %563 = vmatpush1.msra.mxu0 0.0
  %564 = vmatprep.subr.mxu0 0.0
  %565 = vmatpush1.msra.mxu0 0.0
  %566 = vmatprep.subr.mxu0 0.0
  %567 = vmatpush1.msra.mxu0 0.0
  %568 = vmatprep.subr.mxu0 0.0
  %569 = vmatpush1.msra.mxu0 0.0
  %570 = vmatprep.subr.mxu0 0.0
  %571 = vmatpush1.msra.mxu0 0.0
  %572 = vmatprep.subr.mxu0 0.0
  %573 = vmatpush1.msra.mxu0 0.0
  %574 = vmatprep.subr.mxu0 0.0
  %575 = vmatpush1.msra.mxu0 0.0
  %576 = vmatprep.subr.mxu0 0.0
  %577 = vmatpush1.msra.mxu0 0.0
  %578 = vmatprep.mubr.f32.mxu0 0.0
  %v579 = vand.u32 %v14, 4294901760
  %580 = vmatmul.mubr.f32.gmra.mrb[0].mxu0 %v579
  %v581 = vpop.f32.mrb[0].mxu0
  %v582 = vadd.f32 %v463, %v581
  %v583 = vpop.f32.mrb[0].mxu0
  %584 = vdwg.mxu0
  %585 = vmatprep.subr.mxu0 0.0
  %v586 = vand.u32 %v15, 4294901760
  %587 = vmatpush1.msra.mxu0 %v586
  %588 = vmatprep.subr.mxu0 0.0
  %v589 = vand.u32 %v16, 4294901760
  %590 = vmatpush1.msra.mxu0 %v589
  %591 = vmatprep.subr.mxu0 0.0
  %v592 = vand.u32 %v17, 4294901760
  %593 = vmatpush1.msra.mxu0 %v592
  %594 = vmatprep.subr.mxu0 0.0
  %v595 = vand.u32 %v18, 4294901760
  %596 = vmatpush1.msra.mxu0 %v595
  %597 = vmatprep.subr.mxu0 0.0
  %v598 = vand.u32 %v19, 4294901760
  %599 = vmatpush1.msra.mxu0 %v598
  %600 = vmatprep.subr.mxu0 0.0
  %v601 = vand.u32 %v20, 4294901760
  %602 = vmatpush1.msra.mxu0 %v601
  %603 = vmatprep.subr.mxu0 0.0
  %v604 = vand.u32 %v21, 4294901760
  %605 = vmatpush1.msra.mxu0 %v604
  %606 = vmatprep.subr.mxu0 0.0
  %v607 = vand.u32 %v22, 4294901760
  %608 = vmatpush1.msra.mxu0 %v607
  %609 = vmatprep.subr.mxu0 0.0
  %v610 = vand.u32 %v23, 4294901760
  %611 = vmatpush1.msra.mxu0 %v610
  %612 = vmatprep.subr.mxu0 0.0
  %v613 = vand.u32 %v24, 4294901760
  %614 = vmatpush1.msra.mxu0 %v613
  %615 = vmatprep.subr.mxu0 0.0
  %v616 = vand.u32 %v25, 4294901760
  %617 = vmatpush1.msra.mxu0 %v616
  %618 = vmatprep.subr.mxu0 0.0
  %v619 = vand.u32 %v26, 4294901760
  %620 = vmatpush1.msra.mxu0 %v619
  %621 = vmatprep.subr.mxu0 0.0
  %v622 = vand.u32 %v27, 4294901760
  %623 = vmatpush1.msra.mxu0 %v622
  %624 = vmatprep.subr.mxu0 0.0
  %v625 = vand.u32 %v28, 4294901760
  %626 = vmatpush1.msra.mxu0 %v625
  %627 = vmatprep.subr.mxu0 0.0
  %v628 = vand.u32 %v29, 4294901760
  %629 = vmatpush1.msra.mxu0 %v628
  %630 = vmatprep.subr.mxu0 0.0
  %v631 = vand.u32 %v30, 4294901760
  %632 = vmatpush1.msra.mxu0 %v631
  %633 = vmatprep.subr.mxu0 0.0
  %634 = vmatpush1.msra.mxu0 0.0
  %635 = vmatprep.subr.mxu0 0.0
  %636 = vmatpush1.msra.mxu0 0.0
  %637 = vmatprep.subr.mxu0 0.0
  %638 = vmatpush1.msra.mxu0 0.0
  %639 = vmatprep.subr.mxu0 0.0
  %640 = vmatpush1.msra.mxu0 0.0
  %641 = vmatprep.subr.mxu0 0.0
  %642 = vmatpush1.msra.mxu0 0.0
  %643 = vmatprep.subr.mxu0 0.0
  %644 = vmatpush1.msra.mxu0 0.0
  %645 = vmatprep.subr.mxu0 0.0
  %646 = vmatpush1.msra.mxu0 0.0
  %647 = vmatprep.subr.mxu0 0.0
  %648 = vmatpush1.msra.mxu0 0.0
  %649 = vmatprep.subr.mxu0 0.0
  %650 = vmatpush1.msra.mxu0 0.0
  %651 = vmatprep.subr.mxu0 0.0
  %652 = vmatpush1.msra.mxu0 0.0
  %653 = vmatprep.subr.mxu0 0.0
  %654 = vmatpush1.msra.mxu0 0.0
  %655 = vmatprep.subr.mxu0 0.0
  %656 = vmatpush1.msra.mxu0 0.0
  %657 = vmatprep.subr.mxu0 0.0
  %658 = vmatpush1.msra.mxu0 0.0
  %659 = vmatprep.subr.mxu0 0.0
  %660 = vmatpush1.msra.mxu0 0.0
  %661 = vmatprep.subr.mxu0 0.0
  %662 = vmatpush1.msra.mxu0 0.0
  %663 = vmatprep.subr.mxu0 0.0
  %664 = vmatpush1.msra.mxu0 0.0
  %665 = vmatprep.mubr.f32.mxu0 0.0
  %v666 = vand.u32 %v14, 4294901760
  %667 = vmatmul.mubr.f32.gmra.mrb[0].mxu0 %v666
  %v668 = vpop.f32.mrb[0].mxu0
  %v669 = vadd.f32 %v582, %v668
  %v670 = vpop.f32.mrb[0].mxu0
  %671 = vdwg.mxu0
  %v672 = vmul.f32 %v14, %v669
  %v673 = vld [vmem:[%s2] sm:$0x1]
  %v674 = vlaneseq
  %v675 = vshrl.u32 %v674, 7
  %v676 = vsub.s32 0, %v675
  %v677 = vrot.slane %v673, %v676
  %v678 = vadd.f32 %v672, %v677
  %v679 = vadd.f32 %v678, %v14
  %s680 = scalar_lea.vmem %s1, 128
  %v681 = vld [vmem:[%s680] sm:$0xff]
  %v682 = vld [vmem:[%s680 + $0x8] sm:$0xff]
  %v683 = vld [vmem:[%s680 + $0x10] sm:$0xff]
  %v684 = vld [vmem:[%s680 + $0x18] sm:$0xff]
  %v685 = vld [vmem:[%s680 + $0x20] sm:$0xff]
  %v686 = vld [vmem:[%s680 + $0x28] sm:$0xff]
  %v687 = vld [vmem:[%s680 + $0x30] sm:$0xff]
  %v688 = vld [vmem:[%s680 + $0x38] sm:$0xff]
  %v689 = vld [vmem:[%s680 + $0x40] sm:$0xff]
  %v690 = vld [vmem:[%s680 + $0x48] sm:$0xff]
  %v691 = vld [vmem:[%s680 + $0x50] sm:$0xff]
  %v692 = vld [vmem:[%s680 + $0x58] sm:$0xff]
  %v693 = vld [vmem:[%s680 + $0x60] sm:$0xff]
  %v694 = vld [vmem:[%s680 + $0x68] sm:$0xff]
  %v695 = vld [vmem:[%s680 + $0x70] sm:$0xff]
  %v696 = vld [vmem:[%s680 + $0x78] sm:$0xff]
  %697 = vmatprep.subr.mxu0 0.0
  %v698 = vand.u32 %v681, 4294901760
  %699 = vmatpush1.msra.mxu0 %v698
  %700 = vmatprep.subr.mxu0 0.0
  %v701 = vand.u32 %v682, 4294901760
  %702 = vmatpush1.msra.mxu0 %v701
  %703 = vmatprep.subr.mxu0 0.0
  %v704 = vand.u32 %v683, 4294901760
  %705 = vmatpush1.msra.mxu0 %v704
  %706 = vmatprep.subr.mxu0 0.0
  %v707 = vand.u32 %v684, 4294901760
  %708 = vmatpush1.msra.mxu0 %v707
  %709 = vmatprep.subr.mxu0 0.0
  %v710 = vand.u32 %v685, 4294901760
  %711 = vmatpush1.msra.mxu0 %v710
  %712 = vmatprep.subr.mxu0 0.0
  %v713 = vand.u32 %v686, 4294901760
  %714 = vmatpush1.msra.mxu0 %v713
  %715 = vmatprep.subr.mxu0 0.0
  %v716 = vand.u32 %v687, 4294901760
  %717 = vmatpush1.msra.mxu0 %v716
  %718 = vmatprep.subr.mxu0 0.0
  %v719 = vand.u32 %v688, 4294901760
  %720 = vmatpush1.msra.mxu0 %v719
  %721 = vmatprep.subr.mxu0 0.0
  %v722 = vand.u32 %v689, 4294901760
  %723 = vmatpush1.msra.mxu0 %v722
  %724 = vmatprep.subr.mxu0 0.0
  %v725 = vand.u32 %v690, 4294901760
  %726 = vmatpush1.msra.mxu0 %v725
  %727 = vmatprep.subr.mxu0 0.0
  %v728 = vand.u32 %v691, 4294901760
  %729 = vmatpush1.msra.mxu0 %v728
  %730 = vmatprep.subr.mxu0 0.0
  %v731 = vand.u32 %v692, 4294901760
  %732 = vmatpush1.msra.mxu0 %v731
  %733 = vmatprep.subr.mxu0 0.0
  %v734 = vand.u32 %v693, 4294901760
  %735 = vmatpush1.msra.mxu0 %v734
  %736 = vmatprep.subr.mxu0 0.0
  %v737 = vand.u32 %v694, 4294901760
  %738 = vmatpush1.msra.mxu0 %v737
  %739 = vmatprep.subr.mxu0 0.0
  %v740 = vand.u32 %v695, 4294901760
  %741 = vmatpush1.msra.mxu0 %v740
  %742 = vmatprep.subr.mxu0 0.0
  %v743 = vand.u32 %v696, 4294901760
  %744 = vmatpush1.msra.mxu0 %v743
  %745 = vmatprep.subr.mxu0 0.0
  %746 = vmatpush1.msra.mxu0 0.0
  %747 = vmatprep.subr.mxu0 0.0
  %748 = vmatpush1.msra.mxu0 0.0
  %749 = vmatprep.subr.mxu0 0.0
  %750 = vmatpush1.msra.mxu0 0.0
  %751 = vmatprep.subr.mxu0 0.0
  %752 = vmatpush1.msra.mxu0 0.0
  %753 = vmatprep.subr.mxu0 0.0
  %754 = vmatpush1.msra.mxu0 0.0
  %755 = vmatprep.subr.mxu0 0.0
  %756 = vmatpush1.msra.mxu0 0.0
  %757 = vmatprep.subr.mxu0 0.0
  %758 = vmatpush1.msra.mxu0 0.0
  %759 = vmatprep.subr.mxu0 0.0
  %760 = vmatpush1.msra.mxu0 0.0
  %761 = vmatprep.subr.mxu0 0.0
  %762 = vmatpush1.msra.mxu0 0.0
  %763 = vmatprep.subr.mxu0 0.0
  %764 = vmatpush1.msra.mxu0 0.0
  %765 = vmatprep.subr.mxu0 0.0
  %766 = vmatpush1.msra.mxu0 0.0
  %767 = vmatprep.subr.mxu0 0.0
  %768 = vmatpush1.msra.mxu0 0.0
  %769 = vmatprep.subr.mxu0 0.0
  %770 = vmatpush1.msra.mxu0 0.0
  %771 = vmatprep.subr.mxu0 0.0
  %772 = vmatpush1.msra.mxu0 0.0
  %773 = vmatprep.subr.mxu0 0.0
  %774 = vmatpush1.msra.mxu0 0.0
  %775 = vmatprep.subr.mxu0 0.0
  %776 = vmatpush1.msra.mxu0 0.0
  %777 = vmatprep.mubr.f32.mxu0 0.0
  %v778 = vand.u32 %v679, 4294901760
  %v779 = vsub.f32 %v679, %v778
  %v780 = vand.u32 %v779, 4294901760
  %v781 = vsub.f32 %v779, %v780
  %v782 = vand.u32 %v781, 4294901760
  %783 = vmatmul.mubr.f32.gmra.mrb[0].mxu0 %v782
  %v784 = vpop.f32.mrb[0].mxu0
  %v785 = vadd.f32 0.0, %v784
  %v786 = vpop.f32.mrb[0].mxu0
  %787 = vdwg.mxu0
  %788 = vmatprep.subr.mxu0 0.0
  %v789 = vand.u32 %v681, 4294901760
  %v790 = vsub.f32 %v681, %v789
  %v791 = vand.u32 %v790, 4294901760
  %v792 = vsub.f32 %v790, %v791
  %v793 = vand.u32 %v792, 4294901760
  %794 = vmatpush1.msra.mxu0 %v793
  %795 = vmatprep.subr.mxu0 0.0
  %v796 = vand.u32 %v682, 4294901760
  %v797 = vsub.f32 %v682, %v796
  %v798 = vand.u32 %v797, 4294901760
  %v799 = vsub.f32 %v797, %v798
  %v800 = vand.u32 %v799, 4294901760
  %801 = vmatpush1.msra.mxu0 %v800
  %802 = vmatprep.subr.mxu0 0.0
  %v803 = vand.u32 %v683, 4294901760
  %v804 = vsub.f32 %v683, %v803
  %v805 = vand.u32 %v804, 4294901760
  %v806 = vsub.f32 %v804, %v805
  %v807 = vand.u32 %v806, 4294901760
  %808 = vmatpush1.msra.mxu0 %v807
  %809 = vmatprep.subr.mxu0 0.0
  %v810 = vand.u32 %v684, 4294901760
  %v811 = vsub.f32 %v684, %v810
  %v812 = vand.u32 %v811, 4294901760
  %v813 = vsub.f32 %v811, %v812
  %v814 = vand.u32 %v813, 4294901760
  %815 = vmatpush1.msra.mxu0 %v814
  %816 = vmatprep.subr.mxu0 0.0
  %v817 = vand.u32 %v685, 4294901760
  %v818 = vsub.f32 %v685, %v817
  %v819 = vand.u32 %v818, 4294901760
  %v820 = vsub.f32 %v818, %v819
  %v821 = vand.u32 %v820, 4294901760
  %822 = vmatpush1.msra.mxu0 %v821
  %823 = vmatprep.subr.mxu0 0.0
  %v824 = vand.u32 %v686, 4294901760
  %v825 = vsub.f32 %v686, %v824
  %v826 = vand.u32 %v825, 4294901760
  %v827 = vsub.f32 %v825, %v826
  %v828 = vand.u32 %v827, 4294901760
  %829 = vmatpush1.msra.mxu0 %v828
  %830 = vmatprep.subr.mxu0 0.0
  %v831 = vand.u32 %v687, 4294901760
  %v832 = vsub.f32 %v687, %v831
  %v833 = vand.u32 %v832, 4294901760
  %v834 = vsub.f32 %v832, %v833
  %v835 = vand.u32 %v834, 4294901760
  %836 = vmatpush1.msra.mxu0 %v835
  %837 = vmatprep.subr.mxu0 0.0
  %v838 = vand.u32 %v688, 4294901760
  %v839 = vsub.f32 %v688, %v838
  %v840 = vand.u32 %v839, 4294901760
  %v841 = vsub.f32 %v839, %v840
  %v842 = vand.u32 %v841, 4294901760
  %843 = vmatpush1.msra.mxu0 %v842
  %844 = vmatprep.subr.mxu0 0.0
  %v845 = vand.u32 %v689, 4294901760
  %v846 = vsub.f32 %v689, %v845
  %v847 = vand.u32 %v846, 4294901760
  %v848 = vsub.f32 %v846, %v847
  %v849 = vand.u32 %v848, 4294901760
  %850 = vmatpush1.msra.mxu0 %v849
  %851 = vmatprep.subr.mxu0 0.0
  %v852 = vand.u32 %v690, 4294901760
  %v853 = vsub.f32 %v690, %v852
  %v854 = vand.u32 %v853, 4294901760
  %v855 = vsub.f32 %v853, %v854
  %v856 = vand.u32 %v855, 4294901760
  %857 = vmatpush1.msra.mxu0 %v856
  %858 = vmatprep.subr.mxu0 0.0
  %v859 = vand.u32 %v691, 4294901760
  %v860 = vsub.f32 %v691, %v859
  %v861 = vand.u32 %v860, 4294901760
  %v862 = vsub.f32 %v860, %v861
  %v863 = vand.u32 %v862, 4294901760
  %864 = vmatpush1.msra.mxu0 %v863
  %865 = vmatprep.subr.mxu0 0.0
  %v866 = vand.u32 %v692, 4294901760
  %v867 = vsub.f32 %v692, %v866
  %v868 = vand.u32 %v867, 4294901760
  %v869 = vsub.f32 %v867, %v868
  %v870 = vand.u32 %v869, 4294901760
  %871 = vmatpush1.msra.mxu0 %v870
  %872 = vmatprep.subr.mxu0 0.0
  %v873 = vand.u32 %v693, 4294901760
  %v874 = vsub.f32 %v693, %v873
  %v875 = vand.u32 %v874, 4294901760
  %v876 = vsub.f32 %v874, %v875
  %v877 = vand.u32 %v876, 4294901760
  %878 = vmatpush1.msra.mxu0 %v877
  %879 = vmatprep.subr.mxu0 0.0
  %v880 = vand.u32 %v694, 4294901760
  %v881 = vsub.f32 %v694, %v880
  %v882 = vand.u32 %v881, 4294901760
  %v883 = vsub.f32 %v881, %v882
  %v884 = vand.u32 %v883, 4294901760
  %885 = vmatpush1.msra.mxu0 %v884
  %886 = vmatprep.subr.mxu0 0.0
  %v887 = vand.u32 %v695, 4294901760
  %v888 = vsub.f32 %v695, %v887
  %v889 = vand.u32 %v888, 4294901760
  %v890 = vsub.f32 %v888, %v889
  %v891 = vand.u32 %v890, 4294901760
  %892 = vmatpush1.msra.mxu0 %v891
  %893 = vmatprep.subr.mxu0 0.0
  %v894 = vand.u32 %v696, 4294901760
  %v895 = vsub.f32 %v696, %v894
  %v896 = vand.u32 %v895, 4294901760
  %v897 = vsub.f32 %v895, %v896
  %v898 = vand.u32 %v897, 4294901760
  %899 = vmatpush1.msra.mxu0 %v898
  %900 = vmatprep.subr.mxu0 0.0
  %901 = vmatpush1.msra.mxu0 0.0
  %902 = vmatprep.subr.mxu0 0.0
  %903 = vmatpush1.msra.mxu0 0.0
  %904 = vmatprep.subr.mxu0 0.0
  %905 = vmatpush1.msra.mxu0 0.0
  %906 = vmatprep.subr.mxu0 0.0
  %907 = vmatpush1.msra.mxu0 0.0
  %908 = vmatprep.subr.mxu0 0.0
  %909 = vmatpush1.msra.mxu0 0.0
  %910 = vmatprep.subr.mxu0 0.0
  %911 = vmatpush1.msra.mxu0 0.0
  %912 = vmatprep.subr.mxu0 0.0
  %913 = vmatpush1.msra.mxu0 0.0
  %914 = vmatprep.subr.mxu0 0.0
  %915 = vmatpush1.msra.mxu0 0.0
  %916 = vmatprep.subr.mxu0 0.0
  %917 = vmatpush1.msra.mxu0 0.0
  %918 = vmatprep.subr.mxu0 0.0
  %919 = vmatpush1.msra.mxu0 0.0
  %920 = vmatprep.subr.mxu0 0.0
  %921 = vmatpush1.msra.mxu0 0.0
  %922 = vmatprep.subr.mxu0 0.0
  %923 = vmatpush1.msra.mxu0 0.0
  %924 = vmatprep.subr.mxu0 0.0
  %925 = vmatpush1.msra.mxu0 0.0
  %926 = vmatprep.subr.mxu0 0.0
  %927 = vmatpush1.msra.mxu0 0.0
  %928 = vmatprep.subr.mxu0 0.0
  %929 = vmatpush1.msra.mxu0 0.0
  %930 = vmatprep.subr.mxu0 0.0
  %931 = vmatpush1.msra.mxu0 0.0
  %932 = vmatprep.mubr.f32.mxu0 0.0
  %v933 = vand.u32 %v679, 4294901760
  %934 = vmatmul.mubr.f32.gmra.mrb[0].mxu0 %v933
  %v935 = vpop.f32.mrb[0].mxu0
  %v936 = vadd.f32 %v785, %v935
  %v937 = vpop.f32.mrb[0].mxu0
  %938 = vdwg.mxu0
  %939 = vmatprep.subr.mxu0 0.0
  %v940 = vand.u32 %v681, 4294901760
  %v941 = vsub.f32 %v681, %v940
  %942 = vmatpush1.msra.mxu0 %v941
  %943 = vmatprep.subr.mxu0 0.0
  %v944 = vand.u32 %v682, 4294901760
  %v945 = vsub.f32 %v682, %v944
  %946 = vmatpush1.msra.mxu0 %v945
  %947 = vmatprep.subr.mxu0 0.0
  %v948 = vand.u32 %v683, 4294901760
  %v949 = vsub.f32 %v683, %v948
  %950 = vmatpush1.msra.mxu0 %v949
  %951 = vmatprep.subr.mxu0 0.0
  %v952 = vand.u32 %v684, 4294901760
  %v953 = vsub.f32 %v684, %v952
  %954 = vmatpush1.msra.mxu0 %v953
  %955 = vmatprep.subr.mxu0 0.0
  %v956 = vand.u32 %v685, 4294901760
  %v957 = vsub.f32 %v685, %v956
  %958 = vmatpush1.msra.mxu0 %v957
  %959 = vmatprep.subr.mxu0 0.0
  %v960 = vand.u32 %v686, 4294901760
  %v961 = vsub.f32 %v686, %v960
  %962 = vmatpush1.msra.mxu0 %v961
  %963 = vmatprep.subr.mxu0 0.0
  %v964 = vand.u32 %v687, 4294901760
  %v965 = vsub.f32 %v687, %v964
  %966 = vmatpush1.msra.mxu0 %v965
  %967 = vmatprep.subr.mxu0 0.0
  %v968 = vand.u32 %v688, 4294901760
  %v969 = vsub.f32 %v688, %v968
  %970 = vmatpush1.msra.mxu0 %v969
  %971 = vmatprep.subr.mxu0 0.0
  %v972 = vand.u32 %v689, 4294901760
  %v973 = vsub.f32 %v689, %v972
  %974 = vmatpush1.msra.mxu0 %v973
  %975 = vmatprep.subr.mxu0 0.0
  %v976 = vand.u32 %v690, 4294901760
  %v977 = vsub.f32 %v690, %v976
  %978 = vmatpush1.msra.mxu0 %v977
  %979 = vmatprep.subr.mxu0 0.0
  %v980 = vand.u32 %v691, 4294901760
  %v981 = vsub.f32 %v691, %v980
  %982 = vmatpush1.msra.mxu0 %v981
  %983 = vmatprep.subr.mxu0 0.0
  %v984 = vand.u32 %v692, 4294901760
  %v985 = vsub.f32 %v692, %v984
  %986 = vmatpush1.msra.mxu0 %v985
  %987 = vmatprep.subr.mxu0 0.0
  %v988 = vand.u32 %v693, 4294901760
  %v989 = vsub.f32 %v693, %v988
  %990 = vmatpush1.msra.mxu0 %v989
  %991 = vmatprep.subr.mxu0 0.0
  %v992 = vand.u32 %v694, 4294901760
  %v993 = vsub.f32 %v694, %v992
  %994 = vmatpush1.msra.mxu0 %v993
  %995 = vmatprep.subr.mxu0 0.0
  %v996 = vand.u32 %v695, 4294901760
  %v997 = vsub.f32 %v695, %v996
  %998 = vmatpush1.msra.mxu0 %v997
  %999 = vmatprep.subr.mxu0 0.0
  %v1000 = vand.u32 %v696, 4294901760
  %v1001 = vsub.f32 %v696, %v1000
  %1002 = vmatpush1.msra.mxu0 %v1001
  %1003 = vmatprep.subr.mxu0 0.0
  %1004 = vmatpush1.msra.mxu0 0.0
  %1005 = vmatprep.subr.mxu0 0.0
  %1006 = vmatpush1.msra.mxu0 0.0
  %1007 = vmatprep.subr.mxu0 0.0
  %1008 = vmatpush1.msra.mxu0 0.0
  %1009 = vmatprep.subr.mxu0 0.0
  %1010 = vmatpush1.msra.mxu0 0.0
  %1011 = vmatprep.subr.mxu0 0.0
  %1012 = vmatpush1.msra.mxu0 0.0
  %1013 = vmatprep.subr.mxu0 0.0
  %1014 = vmatpush1.msra.mxu0 0.0
  %1015 = vmatprep.subr.mxu0 0.0
  %1016 = vmatpush1.msra.mxu0 0.0
  %1017 = vmatprep.subr.mxu0 0.0
  %1018 = vmatpush1.msra.mxu0 0.0
  %1019 = vmatprep.subr.mxu0 0.0
  %1020 = vmatpush1.msra.mxu0 0.0
  %1021 = vmatprep.subr.mxu0 0.0
  %1022 = vmatpush1.msra.mxu0 0.0
  %1023 = vmatprep.subr.mxu0 0.0
  %1024 = vmatpush1.msra.mxu0 0.0
  %1025 = vmatprep.subr.mxu0 0.0
  %1026 = vmatpush1.msra.mxu0 0.0
  %1027 = vmatprep.subr.mxu0 0.0
  %1028 = vmatpush1.msra.mxu0 0.0
  %1029 = vmatprep.subr.mxu0 0.0
  %1030 = vmatpush1.msra.mxu0 0.0
  %1031 = vmatprep.subr.mxu0 0.0
  %1032 = vmatpush1.msra.mxu0 0.0
  %1033 = vmatprep.subr.mxu0 0.0
  %1034 = vmatpush1.msra.mxu0 0.0
  %1035 = vmatprep.mubr.f32.mxu0 0.0
  %v1036 = vand.u32 %v679, 4294901760
  %v1037 = vsub.f32 %v679, %v1036
  %1038 = vmatmul.mubr.f32.gmra.mrb[0].mxu0 %v1037
  %v1039 = vpop.f32.mrb[0].mxu0
  %v1040 = vadd.f32 %v936, %v1039
  %v1041 = vpop.f32.mrb[0].mxu0
  %1042 = vdwg.mxu0
  %1043 = vmatprep.subr.mxu0 0.0
  %v1044 = vand.u32 %v681, 4294901760
  %1045 = vmatpush1.msra.mxu0 %v1044
  %1046 = vmatprep.subr.mxu0 0.0
  %v1047 = vand.u32 %v682, 4294901760
  %1048 = vmatpush1.msra.mxu0 %v1047
  %1049 = vmatprep.subr.mxu0 0.0
  %v1050 = vand.u32 %v683, 4294901760
  %1051 = vmatpush1.msra.mxu0 %v1050
  %1052 = vmatprep.subr.mxu0 0.0
  %v1053 = vand.u32 %v684, 4294901760
  %1054 = vmatpush1.msra.mxu0 %v1053
  %1055 = vmatprep.subr.mxu0 0.0
  %v1056 = vand.u32 %v685, 4294901760
  %1057 = vmatpush1.msra.mxu0 %v1056
  %1058 = vmatprep.subr.mxu0 0.0
  %v1059 = vand.u32 %v686, 4294901760
  %1060 = vmatpush1.msra.mxu0 %v1059
  %1061 = vmatprep.subr.mxu0 0.0
  %v1062 = vand.u32 %v687, 4294901760
  %1063 = vmatpush1.msra.mxu0 %v1062
  %1064 = vmatprep.subr.mxu0 0.0
  %v1065 = vand.u32 %v688, 4294901760
  %1066 = vmatpush1.msra.mxu0 %v1065
  %1067 = vmatprep.subr.mxu0 0.0
  %v1068 = vand.u32 %v689, 4294901760
  %1069 = vmatpush1.msra.mxu0 %v1068
  %1070 = vmatprep.subr.mxu0 0.0
  %v1071 = vand.u32 %v690, 4294901760
  %1072 = vmatpush1.msra.mxu0 %v1071
  %1073 = vmatprep.subr.mxu0 0.0
  %v1074 = vand.u32 %v691, 4294901760
  %1075 = vmatpush1.msra.mxu0 %v1074
  %1076 = vmatprep.subr.mxu0 0.0
  %v1077 = vand.u32 %v692, 4294901760
  %1078 = vmatpush1.msra.mxu0 %v1077
  %1079 = vmatprep.subr.mxu0 0.0
  %v1080 = vand.u32 %v693, 4294901760
  %1081 = vmatpush1.msra.mxu0 %v1080
  %1082 = vmatprep.subr.mxu0 0.0
  %v1083 = vand.u32 %v694, 4294901760
  %1084 = vmatpush1.msra.mxu0 %v1083
  %1085 = vmatprep.subr.mxu0 0.0
  %v1086 = vand.u32 %v695, 4294901760
  %1087 = vmatpush1.msra.mxu0 %v1086
  %1088 = vmatprep.subr.mxu0 0.0
  %v1089 = vand.u32 %v696, 4294901760
  %1090 = vmatpush1.msra.mxu0 %v1089
  %1091 = vmatprep.subr.mxu0 0.0
  %1092 = vmatpush1.msra.mxu0 0.0
  %1093 = vmatprep.subr.mxu0 0.0
  %1094 = vmatpush1.msra.mxu0 0.0
  %1095 = vmatprep.subr.mxu0 0.0
  %1096 = vmatpush1.msra.mxu0 0.0
  %1097 = vmatprep.subr.mxu0 0.0
  %1098 = vmatpush1.msra.mxu0 0.0
  %1099 = vmatprep.subr.mxu0 0.0
  %1100 = vmatpush1.msra.mxu0 0.0
  %1101 = vmatprep.subr.mxu0 0.0
  %1102 = vmatpush1.msra.mxu0 0.0
  %1103 = vmatprep.subr.mxu0 0.0
  %1104 = vmatpush1.msra.mxu0 0.0
  %1105 = vmatprep.subr.mxu0 0.0
  %1106 = vmatpush1.msra.mxu0 0.0
  %1107 = vmatprep.subr.mxu0 0.0
  %1108 = vmatpush1.msra.mxu0 0.0
  %1109 = vmatprep.subr.mxu0 0.0
  %1110 = vmatpush1.msra.mxu0 0.0
  %1111 = vmatprep.subr.mxu0 0.0
  %1112 = vmatpush1.msra.mxu0 0.0
  %1113 = vmatprep.subr.mxu0 0.0
  %1114 = vmatpush1.msra.mxu0 0.0
  %1115 = vmatprep.subr.mxu0 0.0
  %1116 = vmatpush1.msra.mxu0 0.0
  %1117 = vmatprep.subr.mxu0 0.0
  %1118 = vmatpush1.msra.mxu0 0.0
  %1119 = vmatprep.subr.mxu0 0.0
  %1120 = vmatpush1.msra.mxu0 0.0
  %1121 = vmatprep.subr.mxu0 0.0
  %1122 = vmatpush1.msra.mxu0 0.0
  %1123 = vmatprep.mubr.f32.mxu0 0.0
  %v1124 = vand.u32 %v679, 4294901760
  %v1125 = vsub.f32 %v679, %v1124
  %v1126 = vand.u32 %v1125, 4294901760
  %1127 = vmatmul.mubr.f32.gmra.mrb[0].mxu0 %v1126
  %v1128 = vpop.f32.mrb[0].mxu0
  %v1129 = vadd.f32 %v1040, %v1128
  %v1130 = vpop.f32.mrb[0].mxu0
  %1131 = vdwg.mxu0
  %1132 = vmatprep.subr.mxu0 0.0
  %v1133 = vand.u32 %v681, 4294901760
  %v1134 = vsub.f32 %v681, %v1133
  %v1135 = vand.u32 %v1134, 4294901760
  %1136 = vmatpush1.msra.mxu0 %v1135
  %1137 = vmatprep.subr.mxu0 0.0
  %v1138 = vand.u32 %v682, 4294901760
  %v1139 = vsub.f32 %v682, %v1138
  %v1140 = vand.u32 %v1139, 4294901760
  %1141 = vmatpush1.msra.mxu0 %v1140
  %1142 = vmatprep.subr.mxu0 0.0
  %v1143 = vand.u32 %v683, 4294901760
  %v1144 = vsub.f32 %v683, %v1143
  %v1145 = vand.u32 %v1144, 4294901760
  %1146 = vmatpush1.msra.mxu0 %v1145
  %1147 = vmatprep.subr.mxu0 0.0
  %v1148 = vand.u32 %v684, 4294901760
  %v1149 = vsub.f32 %v684, %v1148
  %v1150 = vand.u32 %v1149, 4294901760
  %1151 = vmatpush1.msra.mxu0 %v1150
  %1152 = vmatprep.subr.mxu0 0.0
  %v1153 = vand.u32 %v685, 4294901760
  %v1154 = vsub.f32 %v685, %v1153
  %v1155 = vand.u32 %v1154, 4294901760
  %1156 = vmatpush1.msra.mxu0 %v1155
  %1157 = vmatprep.subr.mxu0 0.0
  %v1158 = vand.u32 %v686, 4294901760
  %v1159 = vsub.f32 %v686, %v1158
  %v1160 = vand.u32 %v1159, 4294901760
  %1161 = vmatpush1.msra.mxu0 %v1160
  %1162 = vmatprep.subr.mxu0 0.0
  %v1163 = vand.u32 %v687, 4294901760
  %v1164 = vsub.f32 %v687, %v1163
  %v1165 = vand.u32 %v1164, 4294901760
  %1166 = vmatpush1.msra.mxu0 %v1165
  %1167 = vmatprep.subr.mxu0 0.0
  %v1168 = vand.u32 %v688, 4294901760
  %v1169 = vsub.f32 %v688, %v1168
  %v1170 = vand.u32 %v1169, 4294901760
  %1171 = vmatpush1.msra.mxu0 %v1170
  %1172 = vmatprep.subr.mxu0 0.0
  %v1173 = vand.u32 %v689, 4294901760
  %v1174 = vsub.f32 %v689, %v1173
  %v1175 = vand.u32 %v1174, 4294901760
  %1176 = vmatpush1.msra.mxu0 %v1175
  %1177 = vmatprep.subr.mxu0 0.0
  %v1178 = vand.u32 %v690, 4294901760
  %v1179 = vsub.f32 %v690, %v1178
  %v1180 = vand.u32 %v1179, 4294901760
  %1181 = vmatpush1.msra.mxu0 %v1180
  %1182 = vmatprep.subr.mxu0 0.0
  %v1183 = vand.u32 %v691, 4294901760
  %v1184 = vsub.f32 %v691, %v1183
  %v1185 = vand.u32 %v1184, 4294901760
  %1186 = vmatpush1.msra.mxu0 %v1185
  %1187 = vmatprep.subr.mxu0 0.0
  %v1188 = vand.u32 %v692, 4294901760
  %v1189 = vsub.f32 %v692, %v1188
  %v1190 = vand.u32 %v1189, 4294901760
  %1191 = vmatpush1.msra.mxu0 %v1190
  %1192 = vmatprep.subr.mxu0 0.0
  %v1193 = vand.u32 %v693, 4294901760
  %v1194 = vsub.f32 %v693, %v1193
  %v1195 = vand.u32 %v1194, 4294901760
  %1196 = vmatpush1.msra.mxu0 %v1195
  %1197 = vmatprep.subr.mxu0 0.0
  %v1198 = vand.u32 %v694, 4294901760
  %v1199 = vsub.f32 %v694, %v1198
  %v1200 = vand.u32 %v1199, 4294901760
  %1201 = vmatpush1.msra.mxu0 %v1200
  %1202 = vmatprep.subr.mxu0 0.0
  %v1203 = vand.u32 %v695, 4294901760
  %v1204 = vsub.f32 %v695, %v1203
  %v1205 = vand.u32 %v1204, 4294901760
  %1206 = vmatpush1.msra.mxu0 %v1205
  %1207 = vmatprep.subr.mxu0 0.0
  %v1208 = vand.u32 %v696, 4294901760
  %v1209 = vsub.f32 %v696, %v1208
  %v1210 = vand.u32 %v1209, 4294901760
  %1211 = vmatpush1.msra.mxu0 %v1210
  %1212 = vmatprep.subr.mxu0 0.0
  %1213 = vmatpush1.msra.mxu0 0.0
  %1214 = vmatprep.subr.mxu0 0.0
  %1215 = vmatpush1.msra.mxu0 0.0
  %1216 = vmatprep.subr.mxu0 0.0
  %1217 = vmatpush1.msra.mxu0 0.0
  %1218 = vmatprep.subr.mxu0 0.0
  %1219 = vmatpush1.msra.mxu0 0.0
  %1220 = vmatprep.subr.mxu0 0.0
  %1221 = vmatpush1.msra.mxu0 0.0
  %1222 = vmatprep.subr.mxu0 0.0
  %1223 = vmatpush1.msra.mxu0 0.0
  %1224 = vmatprep.subr.mxu0 0.0
  %1225 = vmatpush1.msra.mxu0 0.0
  %1226 = vmatprep.subr.mxu0 0.0
  %1227 = vmatpush1.msra.mxu0 0.0
  %1228 = vmatprep.subr.mxu0 0.0
  %1229 = vmatpush1.msra.mxu0 0.0
  %1230 = vmatprep.subr.mxu0 0.0
  %1231 = vmatpush1.msra.mxu0 0.0
  %1232 = vmatprep.subr.mxu0 0.0
  %1233 = vmatpush1.msra.mxu0 0.0
  %1234 = vmatprep.subr.mxu0 0.0
  %1235 = vmatpush1.msra.mxu0 0.0
  %1236 = vmatprep.subr.mxu0 0.0
  %1237 = vmatpush1.msra.mxu0 0.0
  %1238 = vmatprep.subr.mxu0 0.0
  %1239 = vmatpush1.msra.mxu0 0.0
  %1240 = vmatprep.subr.mxu0 0.0
  %1241 = vmatpush1.msra.mxu0 0.0
  %1242 = vmatprep.subr.mxu0 0.0
  %1243 = vmatpush1.msra.mxu0 0.0
  %1244 = vmatprep.mubr.f32.mxu0 0.0
  %v1245 = vand.u32 %v679, 4294901760
  %1246 = vmatmul.mubr.f32.gmra.mrb[0].mxu0 %v1245
  %v1247 = vpop.f32.mrb[0].mxu0
  %v1248 = vadd.f32 %v1129, %v1247
  %v1249 = vpop.f32.mrb[0].mxu0
  %1250 = vdwg.mxu0
  %1251 = vmatprep.subr.mxu0 0.0
  %v1252 = vand.u32 %v681, 4294901760
  %1253 = vmatpush1.msra.mxu0 %v1252
  %1254 = vmatprep.subr.mxu0 0.0
  %v1255 = vand.u32 %v682, 4294901760
  %1256 = vmatpush1.msra.mxu0 %v1255
  %1257 = vmatprep.subr.mxu0 0.0
  %v1258 = vand.u32 %v683, 4294901760
  %1259 = vmatpush1.msra.mxu0 %v1258
  %1260 = vmatprep.subr.mxu0 0.0
  %v1261 = vand.u32 %v684, 4294901760
  %1262 = vmatpush1.msra.mxu0 %v1261
  %1263 = vmatprep.subr.mxu0 0.0
  %v1264 = vand.u32 %v685, 4294901760
  %1265 = vmatpush1.msra.mxu0 %v1264
  %1266 = vmatprep.subr.mxu0 0.0
  %v1267 = vand.u32 %v686, 4294901760
  %1268 = vmatpush1.msra.mxu0 %v1267
  %1269 = vmatprep.subr.mxu0 0.0
  %v1270 = vand.u32 %v687, 4294901760
  %1271 = vmatpush1.msra.mxu0 %v1270
  %1272 = vmatprep.subr.mxu0 0.0
  %v1273 = vand.u32 %v688, 4294901760
  %1274 = vmatpush1.msra.mxu0 %v1273
  %1275 = vmatprep.subr.mxu0 0.0
  %v1276 = vand.u32 %v689, 4294901760
  %1277 = vmatpush1.msra.mxu0 %v1276
  %1278 = vmatprep.subr.mxu0 0.0
  %v1279 = vand.u32 %v690, 4294901760
  %1280 = vmatpush1.msra.mxu0 %v1279
  %1281 = vmatprep.subr.mxu0 0.0
  %v1282 = vand.u32 %v691, 4294901760
  %1283 = vmatpush1.msra.mxu0 %v1282
  %1284 = vmatprep.subr.mxu0 0.0
  %v1285 = vand.u32 %v692, 4294901760
  %1286 = vmatpush1.msra.mxu0 %v1285
  %1287 = vmatprep.subr.mxu0 0.0
  %v1288 = vand.u32 %v693, 4294901760
  %1289 = vmatpush1.msra.mxu0 %v1288
  %1290 = vmatprep.subr.mxu0 0.0
  %v1291 = vand.u32 %v694, 4294901760
  %1292 = vmatpush1.msra.mxu0 %v1291
  %1293 = vmatprep.subr.mxu0 0.0
  %v1294 = vand.u32 %v695, 4294901760
  %1295 = vmatpush1.msra.mxu0 %v1294
  %1296 = vmatprep.subr.mxu0 0.0
  %v1297 = vand.u32 %v696, 4294901760
  %1298 = vmatpush1.msra.mxu0 %v1297
  %1299 = vmatprep.subr.mxu0 0.0
  %1300 = vmatpush1.msra.mxu0 0.0
  %1301 = vmatprep.subr.mxu0 0.0
  %1302 = vmatpush1.msra.mxu0 0.0
  %1303 = vmatprep.subr.mxu0 0.0
  %1304 = vmatpush1.msra.mxu0 0.0
  %1305 = vmatprep.subr.mxu0 0.0
  %1306 = vmatpush1.msra.mxu0 0.0
  %1307 = vmatprep.subr.mxu0 0.0
  %1308 = vmatpush1.msra.mxu0 0.0
  %1309 = vmatprep.subr.mxu0 0.0
  %1310 = vmatpush1.msra.mxu0 0.0
  %1311 = vmatprep.subr.mxu0 0.0
  %1312 = vmatpush1.msra.mxu0 0.0
  %1313 = vmatprep.subr.mxu0 0.0
  %1314 = vmatpush1.msra.mxu0 0.0
  %1315 = vmatprep.subr.mxu0 0.0
  %1316 = vmatpush1.msra.mxu0 0.0
  %1317 = vmatprep.subr.mxu0 0.0
  %1318 = vmatpush1.msra.mxu0 0.0
  %1319 = vmatprep.subr.mxu0 0.0
  %1320 = vmatpush1.msra.mxu0 0.0
  %1321 = vmatprep.subr.mxu0 0.0
  %1322 = vmatpush1.msra.mxu0 0.0
  %1323 = vmatprep.subr.mxu0 0.0
  %1324 = vmatpush1.msra.mxu0 0.0
  %1325 = vmatprep.subr.mxu0 0.0
  %1326 = vmatpush1.msra.mxu0 0.0
  %1327 = vmatprep.subr.mxu0 0.0
  %1328 = vmatpush1.msra.mxu0 0.0
  %1329 = vmatprep.subr.mxu0 0.0
  %1330 = vmatpush1.msra.mxu0 0.0
  %1331 = vmatprep.mubr.f32.mxu0 0.0
  %v1332 = vand.u32 %v679, 4294901760
  %1333 = vmatmul.mubr.f32.gmra.mrb[0].mxu0 %v1332
  %v1334 = vpop.f32.mrb[0].mxu0
  %v1335 = vadd.f32 %v1248, %v1334
  %v1336 = vpop.f32.mrb[0].mxu0
  %1337 = vdwg.mxu0
  %v1338 = vmul.f32 %v14, %v1335
  %v1339 = vld [vmem:[%s2 + $0x1] sm:$0x1]
  %v1340 = vlaneseq
  %v1341 = vshrl.u32 %v1340, 7
  %v1342 = vsub.s32 0, %v1341
  %v1343 = vrot.slane %v1339, %v1342
  %v1344 = vadd.f32 %v1338, %v1343
  %v1345 = vadd.f32 %v1344, %v679
  %s1346 = scalar_lea.vmem %s1, 256
  %v1347 = vld [vmem:[%s1346] sm:$0xff]
  %v1348 = vld [vmem:[%s1346 + $0x8] sm:$0xff]
  %v1349 = vld [vmem:[%s1346 + $0x10] sm:$0xff]
  %v1350 = vld [vmem:[%s1346 + $0x18] sm:$0xff]
  %v1351 = vld [vmem:[%s1346 + $0x20] sm:$0xff]
  %v1352 = vld [vmem:[%s1346 + $0x28] sm:$0xff]
  %v1353 = vld [vmem:[%s1346 + $0x30] sm:$0xff]
  %v1354 = vld [vmem:[%s1346 + $0x38] sm:$0xff]
  %v1355 = vld [vmem:[%s1346 + $0x40] sm:$0xff]
  %v1356 = vld [vmem:[%s1346 + $0x48] sm:$0xff]
  %v1357 = vld [vmem:[%s1346 + $0x50] sm:$0xff]
  %v1358 = vld [vmem:[%s1346 + $0x58] sm:$0xff]
  %v1359 = vld [vmem:[%s1346 + $0x60] sm:$0xff]
  %v1360 = vld [vmem:[%s1346 + $0x68] sm:$0xff]
  %v1361 = vld [vmem:[%s1346 + $0x70] sm:$0xff]
  %v1362 = vld [vmem:[%s1346 + $0x78] sm:$0xff]
  %1363 = vmatprep.subr.mxu0 0.0
  %v1364 = vand.u32 %v1347, 4294901760
  %1365 = vmatpush1.msra.mxu0 %v1364
  %1366 = vmatprep.subr.mxu0 0.0
  %v1367 = vand.u32 %v1348, 4294901760
  %1368 = vmatpush1.msra.mxu0 %v1367
  %1369 = vmatprep.subr.mxu0 0.0
  %v1370 = vand.u32 %v1349, 4294901760
  %1371 = vmatpush1.msra.mxu0 %v1370
  %1372 = vmatprep.subr.mxu0 0.0
  %v1373 = vand.u32 %v1350, 4294901760
  %1374 = vmatpush1.msra.mxu0 %v1373
  %1375 = vmatprep.subr.mxu0 0.0
  %v1376 = vand.u32 %v1351, 4294901760
  %1377 = vmatpush1.msra.mxu0 %v1376
  %1378 = vmatprep.subr.mxu0 0.0
  %v1379 = vand.u32 %v1352, 4294901760
  %1380 = vmatpush1.msra.mxu0 %v1379
  %1381 = vmatprep.subr.mxu0 0.0
  %v1382 = vand.u32 %v1353, 4294901760
  %1383 = vmatpush1.msra.mxu0 %v1382
  %1384 = vmatprep.subr.mxu0 0.0
  %v1385 = vand.u32 %v1354, 4294901760
  %1386 = vmatpush1.msra.mxu0 %v1385
  %1387 = vmatprep.subr.mxu0 0.0
  %v1388 = vand.u32 %v1355, 4294901760
  %1389 = vmatpush1.msra.mxu0 %v1388
  %1390 = vmatprep.subr.mxu0 0.0
  %v1391 = vand.u32 %v1356, 4294901760
  %1392 = vmatpush1.msra.mxu0 %v1391
  %1393 = vmatprep.subr.mxu0 0.0
  %v1394 = vand.u32 %v1357, 4294901760
  %1395 = vmatpush1.msra.mxu0 %v1394
  %1396 = vmatprep.subr.mxu0 0.0
  %v1397 = vand.u32 %v1358, 4294901760
  %1398 = vmatpush1.msra.mxu0 %v1397
  %1399 = vmatprep.subr.mxu0 0.0
  %v1400 = vand.u32 %v1359, 4294901760
  %1401 = vmatpush1.msra.mxu0 %v1400
  %1402 = vmatprep.subr.mxu0 0.0
  %v1403 = vand.u32 %v1360, 4294901760
  %1404 = vmatpush1.msra.mxu0 %v1403
  %1405 = vmatprep.subr.mxu0 0.0
  %v1406 = vand.u32 %v1361, 4294901760
  %1407 = vmatpush1.msra.mxu0 %v1406
  %1408 = vmatprep.subr.mxu0 0.0
  %v1409 = vand.u32 %v1362, 4294901760
  %1410 = vmatpush1.msra.mxu0 %v1409
  %1411 = vmatprep.subr.mxu0 0.0
  %1412 = vmatpush1.msra.mxu0 0.0
  %1413 = vmatprep.subr.mxu0 0.0
  %1414 = vmatpush1.msra.mxu0 0.0
  %1415 = vmatprep.subr.mxu0 0.0
  %1416 = vmatpush1.msra.mxu0 0.0
  %1417 = vmatprep.subr.mxu0 0.0
  %1418 = vmatpush1.msra.mxu0 0.0
  %1419 = vmatprep.subr.mxu0 0.0
  %1420 = vmatpush1.msra.mxu0 0.0
  %1421 = vmatprep.subr.mxu0 0.0
  %1422 = vmatpush1.msra.mxu0 0.0
  %1423 = vmatprep.subr.mxu0 0.0
  %1424 = vmatpush1.msra.mxu0 0.0
  %1425 = vmatprep.subr.mxu0 0.0
  %1426 = vmatpush1.msra.mxu0 0.0
  %1427 = vmatprep.subr.mxu0 0.0
  %1428 = vmatpush1.msra.mxu0 0.0
  %1429 = vmatprep.subr.mxu0 0.0
  %1430 = vmatpush1.msra.mxu0 0.0
  %1431 = vmatprep.subr.mxu0 0.0
  %1432 = vmatpush1.msra.mxu0 0.0
  %1433 = vmatprep.subr.mxu0 0.0
  %1434 = vmatpush1.msra.mxu0 0.0
  %1435 = vmatprep.subr.mxu0 0.0
  %1436 = vmatpush1.msra.mxu0 0.0
  %1437 = vmatprep.subr.mxu0 0.0
  %1438 = vmatpush1.msra.mxu0 0.0
  %1439 = vmatprep.subr.mxu0 0.0
  %1440 = vmatpush1.msra.mxu0 0.0
  %1441 = vmatprep.subr.mxu0 0.0
  %1442 = vmatpush1.msra.mxu0 0.0
  %1443 = vmatprep.mubr.f32.mxu0 0.0
  %v1444 = vand.u32 %v1345, 4294901760
  %v1445 = vsub.f32 %v1345, %v1444
  %v1446 = vand.u32 %v1445, 4294901760
  %v1447 = vsub.f32 %v1445, %v1446
  %v1448 = vand.u32 %v1447, 4294901760
  %1449 = vmatmul.mubr.f32.gmra.mrb[0].mxu0 %v1448
  %v1450 = vpop.f32.mrb[0].mxu0
  %v1451 = vadd.f32 0.0, %v1450
  %v1452 = vpop.f32.mrb[0].mxu0
  %1453 = vdwg.mxu0
  %1454 = vmatprep.subr.mxu0 0.0
  %v1455 = vand.u32 %v1347, 4294901760
  %v1456 = vsub.f32 %v1347, %v1455
  %v1457 = vand.u32 %v1456, 4294901760
  %v1458 = vsub.f32 %v1456, %v1457
  %v1459 = vand.u32 %v1458, 4294901760
  %1460 = vmatpush1.msra.mxu0 %v1459
  %1461 = vmatprep.subr.mxu0 0.0
  %v1462 = vand.u32 %v1348, 4294901760
  %v1463 = vsub.f32 %v1348, %v1462
  %v1464 = vand.u32 %v1463, 4294901760
  %v1465 = vsub.f32 %v1463, %v1464
  %v1466 = vand.u32 %v1465, 4294901760
  %1467 = vmatpush1.msra.mxu0 %v1466
  %1468 = vmatprep.subr.mxu0 0.0
  %v1469 = vand.u32 %v1349, 4294901760
  %v1470 = vsub.f32 %v1349, %v1469
  %v1471 = vand.u32 %v1470, 4294901760
  %v1472 = vsub.f32 %v1470, %v1471
  %v1473 = vand.u32 %v1472, 4294901760
  %1474 = vmatpush1.msra.mxu0 %v1473
  %1475 = vmatprep.subr.mxu0 0.0
  %v1476 = vand.u32 %v1350, 4294901760
  %v1477 = vsub.f32 %v1350, %v1476
  %v1478 = vand.u32 %v1477, 4294901760
  %v1479 = vsub.f32 %v1477, %v1478
  %v1480 = vand.u32 %v1479, 4294901760
  %1481 = vmatpush1.msra.mxu0 %v1480
  %1482 = vmatprep.subr.mxu0 0.0
  %v1483 = vand.u32 %v1351, 4294901760
  %v1484 = vsub.f32 %v1351, %v1483
  %v1485 = vand.u32 %v1484, 4294901760
  %v1486 = vsub.f32 %v1484, %v1485
  %v1487 = vand.u32 %v1486, 4294901760
  %1488 = vmatpush1.msra.mxu0 %v1487
  %1489 = vmatprep.subr.mxu0 0.0
  %v1490 = vand.u32 %v1352, 4294901760
  %v1491 = vsub.f32 %v1352, %v1490
  %v1492 = vand.u32 %v1491, 4294901760
  %v1493 = vsub.f32 %v1491, %v1492
  %v1494 = vand.u32 %v1493, 4294901760
  %1495 = vmatpush1.msra.mxu0 %v1494
  %1496 = vmatprep.subr.mxu0 0.0
  %v1497 = vand.u32 %v1353, 4294901760
  %v1498 = vsub.f32 %v1353, %v1497
  %v1499 = vand.u32 %v1498, 4294901760
  %v1500 = vsub.f32 %v1498, %v1499
  %v1501 = vand.u32 %v1500, 4294901760
  %1502 = vmatpush1.msra.mxu0 %v1501
  %1503 = vmatprep.subr.mxu0 0.0
  %v1504 = vand.u32 %v1354, 4294901760
  %v1505 = vsub.f32 %v1354, %v1504
  %v1506 = vand.u32 %v1505, 4294901760
  %v1507 = vsub.f32 %v1505, %v1506
  %v1508 = vand.u32 %v1507, 4294901760
  %1509 = vmatpush1.msra.mxu0 %v1508
  %1510 = vmatprep.subr.mxu0 0.0
  %v1511 = vand.u32 %v1355, 4294901760
  %v1512 = vsub.f32 %v1355, %v1511
  %v1513 = vand.u32 %v1512, 4294901760
  %v1514 = vsub.f32 %v1512, %v1513
  %v1515 = vand.u32 %v1514, 4294901760
  %1516 = vmatpush1.msra.mxu0 %v1515
  %1517 = vmatprep.subr.mxu0 0.0
  %v1518 = vand.u32 %v1356, 4294901760
  %v1519 = vsub.f32 %v1356, %v1518
  %v1520 = vand.u32 %v1519, 4294901760
  %v1521 = vsub.f32 %v1519, %v1520
  %v1522 = vand.u32 %v1521, 4294901760
  %1523 = vmatpush1.msra.mxu0 %v1522
  %1524 = vmatprep.subr.mxu0 0.0
  %v1525 = vand.u32 %v1357, 4294901760
  %v1526 = vsub.f32 %v1357, %v1525
  %v1527 = vand.u32 %v1526, 4294901760
  %v1528 = vsub.f32 %v1526, %v1527
  %v1529 = vand.u32 %v1528, 4294901760
  %1530 = vmatpush1.msra.mxu0 %v1529
  %1531 = vmatprep.subr.mxu0 0.0
  %v1532 = vand.u32 %v1358, 4294901760
  %v1533 = vsub.f32 %v1358, %v1532
  %v1534 = vand.u32 %v1533, 4294901760
  %v1535 = vsub.f32 %v1533, %v1534
  %v1536 = vand.u32 %v1535, 4294901760
  %1537 = vmatpush1.msra.mxu0 %v1536
  %1538 = vmatprep.subr.mxu0 0.0
  %v1539 = vand.u32 %v1359, 4294901760
  %v1540 = vsub.f32 %v1359, %v1539
  %v1541 = vand.u32 %v1540, 4294901760
  %v1542 = vsub.f32 %v1540, %v1541
  %v1543 = vand.u32 %v1542, 4294901760
  %1544 = vmatpush1.msra.mxu0 %v1543
  %1545 = vmatprep.subr.mxu0 0.0
  %v1546 = vand.u32 %v1360, 4294901760
  %v1547 = vsub.f32 %v1360, %v1546
  %v1548 = vand.u32 %v1547, 4294901760
  %v1549 = vsub.f32 %v1547, %v1548
  %v1550 = vand.u32 %v1549, 4294901760
  %1551 = vmatpush1.msra.mxu0 %v1550
  %1552 = vmatprep.subr.mxu0 0.0
  %v1553 = vand.u32 %v1361, 4294901760
  %v1554 = vsub.f32 %v1361, %v1553
  %v1555 = vand.u32 %v1554, 4294901760
  %v1556 = vsub.f32 %v1554, %v1555
  %v1557 = vand.u32 %v1556, 4294901760
  %1558 = vmatpush1.msra.mxu0 %v1557
  %1559 = vmatprep.subr.mxu0 0.0
  %v1560 = vand.u32 %v1362, 4294901760
  %v1561 = vsub.f32 %v1362, %v1560
  %v1562 = vand.u32 %v1561, 4294901760
  %v1563 = vsub.f32 %v1561, %v1562
  %v1564 = vand.u32 %v1563, 4294901760
  %1565 = vmatpush1.msra.mxu0 %v1564
  %1566 = vmatprep.subr.mxu0 0.0
  %1567 = vmatpush1.msra.mxu0 0.0
  %1568 = vmatprep.subr.mxu0 0.0
  %1569 = vmatpush1.msra.mxu0 0.0
  %1570 = vmatprep.subr.mxu0 0.0
  %1571 = vmatpush1.msra.mxu0 0.0
  %1572 = vmatprep.subr.mxu0 0.0
  %1573 = vmatpush1.msra.mxu0 0.0
  %1574 = vmatprep.subr.mxu0 0.0
  %1575 = vmatpush1.msra.mxu0 0.0
  %1576 = vmatprep.subr.mxu0 0.0
  %1577 = vmatpush1.msra.mxu0 0.0
  %1578 = vmatprep.subr.mxu0 0.0
  %1579 = vmatpush1.msra.mxu0 0.0
  %1580 = vmatprep.subr.mxu0 0.0
  %1581 = vmatpush1.msra.mxu0 0.0
  %1582 = vmatprep.subr.mxu0 0.0
  %1583 = vmatpush1.msra.mxu0 0.0
  %1584 = vmatprep.subr.mxu0 0.0
  %1585 = vmatpush1.msra.mxu0 0.0
  %1586 = vmatprep.subr.mxu0 0.0
  %1587 = vmatpush1.msra.mxu0 0.0
  %1588 = vmatprep.subr.mxu0 0.0
  %1589 = vmatpush1.msra.mxu0 0.0
  %1590 = vmatprep.subr.mxu0 0.0
  %1591 = vmatpush1.msra.mxu0 0.0
  %1592 = vmatprep.subr.mxu0 0.0
  %1593 = vmatpush1.msra.mxu0 0.0
  %1594 = vmatprep.subr.mxu0 0.0
  %1595 = vmatpush1.msra.mxu0 0.0
  %1596 = vmatprep.subr.mxu0 0.0
  %1597 = vmatpush1.msra.mxu0 0.0
  %1598 = vmatprep.mubr.f32.mxu0 0.0
  %v1599 = vand.u32 %v1345, 4294901760
  %1600 = vmatmul.mubr.f32.gmra.mrb[0].mxu0 %v1599
  %v1601 = vpop.f32.mrb[0].mxu0
  %v1602 = vadd.f32 %v1451, %v1601
  %v1603 = vpop.f32.mrb[0].mxu0
  %1604 = vdwg.mxu0
  %1605 = vmatprep.subr.mxu0 0.0
  %v1606 = vand.u32 %v1347, 4294901760
  %v1607 = vsub.f32 %v1347, %v1606
  %1608 = vmatpush1.msra.mxu0 %v1607
  %1609 = vmatprep.subr.mxu0 0.0
  %v1610 = vand.u32 %v1348, 4294901760
  %v1611 = vsub.f32 %v1348, %v1610
  %1612 = vmatpush1.msra.mxu0 %v1611
  %1613 = vmatprep.subr.mxu0 0.0
  %v1614 = vand.u32 %v1349, 4294901760
  %v1615 = vsub.f32 %v1349, %v1614
  %1616 = vmatpush1.msra.mxu0 %v1615
  %1617 = vmatprep.subr.mxu0 0.0
  %v1618 = vand.u32 %v1350, 4294901760
  %v1619 = vsub.f32 %v1350, %v1618
  %1620 = vmatpush1.msra.mxu0 %v1619
  %1621 = vmatprep.subr.mxu0 0.0
  %v1622 = vand.u32 %v1351, 4294901760
  %v1623 = vsub.f32 %v1351, %v1622
  %1624 = vmatpush1.msra.mxu0 %v1623
  %1625 = vmatprep.subr.mxu0 0.0
  %v1626 = vand.u32 %v1352, 4294901760
  %v1627 = vsub.f32 %v1352, %v1626
  %1628 = vmatpush1.msra.mxu0 %v1627
  %1629 = vmatprep.subr.mxu0 0.0
  %v1630 = vand.u32 %v1353, 4294901760
  %v1631 = vsub.f32 %v1353, %v1630
  %1632 = vmatpush1.msra.mxu0 %v1631
  %1633 = vmatprep.subr.mxu0 0.0
  %v1634 = vand.u32 %v1354, 4294901760
  %v1635 = vsub.f32 %v1354, %v1634
  %1636 = vmatpush1.msra.mxu0 %v1635
  %1637 = vmatprep.subr.mxu0 0.0
  %v1638 = vand.u32 %v1355, 4294901760
  %v1639 = vsub.f32 %v1355, %v1638
  %1640 = vmatpush1.msra.mxu0 %v1639
  %1641 = vmatprep.subr.mxu0 0.0
  %v1642 = vand.u32 %v1356, 4294901760
  %v1643 = vsub.f32 %v1356, %v1642
  %1644 = vmatpush1.msra.mxu0 %v1643
  %1645 = vmatprep.subr.mxu0 0.0
  %v1646 = vand.u32 %v1357, 4294901760
  %v1647 = vsub.f32 %v1357, %v1646
  %1648 = vmatpush1.msra.mxu0 %v1647
  %1649 = vmatprep.subr.mxu0 0.0
  %v1650 = vand.u32 %v1358, 4294901760
  %v1651 = vsub.f32 %v1358, %v1650
  %1652 = vmatpush1.msra.mxu0 %v1651
  %1653 = vmatprep.subr.mxu0 0.0
  %v1654 = vand.u32 %v1359, 4294901760
  %v1655 = vsub.f32 %v1359, %v1654
  %1656 = vmatpush1.msra.mxu0 %v1655
  %1657 = vmatprep.subr.mxu0 0.0
  %v1658 = vand.u32 %v1360, 4294901760
  %v1659 = vsub.f32 %v1360, %v1658
  %1660 = vmatpush1.msra.mxu0 %v1659
  %1661 = vmatprep.subr.mxu0 0.0
  %v1662 = vand.u32 %v1361, 4294901760
  %v1663 = vsub.f32 %v1361, %v1662
  %1664 = vmatpush1.msra.mxu0 %v1663
  %1665 = vmatprep.subr.mxu0 0.0
  %v1666 = vand.u32 %v1362, 4294901760
  %v1667 = vsub.f32 %v1362, %v1666
  %1668 = vmatpush1.msra.mxu0 %v1667
  %1669 = vmatprep.subr.mxu0 0.0
  %1670 = vmatpush1.msra.mxu0 0.0
  %1671 = vmatprep.subr.mxu0 0.0
  %1672 = vmatpush1.msra.mxu0 0.0
  %1673 = vmatprep.subr.mxu0 0.0
  %1674 = vmatpush1.msra.mxu0 0.0
  %1675 = vmatprep.subr.mxu0 0.0
  %1676 = vmatpush1.msra.mxu0 0.0
  %1677 = vmatprep.subr.mxu0 0.0
  %1678 = vmatpush1.msra.mxu0 0.0
  %1679 = vmatprep.subr.mxu0 0.0
  %1680 = vmatpush1.msra.mxu0 0.0
  %1681 = vmatprep.subr.mxu0 0.0
  %1682 = vmatpush1.msra.mxu0 0.0
  %1683 = vmatprep.subr.mxu0 0.0
  %1684 = vmatpush1.msra.mxu0 0.0
  %1685 = vmatprep.subr.mxu0 0.0
  %1686 = vmatpush1.msra.mxu0 0.0
  %1687 = vmatprep.subr.mxu0 0.0
  %1688 = vmatpush1.msra.mxu0 0.0
  %1689 = vmatprep.subr.mxu0 0.0
  %1690 = vmatpush1.msra.mxu0 0.0
  %1691 = vmatprep.subr.mxu0 0.0
  %1692 = vmatpush1.msra.mxu0 0.0
  %1693 = vmatprep.subr.mxu0 0.0
  %1694 = vmatpush1.msra.mxu0 0.0
  %1695 = vmatprep.subr.mxu0 0.0
  %1696 = vmatpush1.msra.mxu0 0.0
  %1697 = vmatprep.subr.mxu0 0.0
  %1698 = vmatpush1.msra.mxu0 0.0
  %1699 = vmatprep.subr.mxu0 0.0
  %1700 = vmatpush1.msra.mxu0 0.0
  %1701 = vmatprep.mubr.f32.mxu0 0.0
  %v1702 = vand.u32 %v1345, 4294901760
  %v1703 = vsub.f32 %v1345, %v1702
  %1704 = vmatmul.mubr.f32.gmra.mrb[0].mxu0 %v1703
  %v1705 = vpop.f32.mrb[0].mxu0
  %v1706 = vadd.f32 %v1602, %v1705
  %v1707 = vpop.f32.mrb[0].mxu0
  %1708 = vdwg.mxu0
  %1709 = vmatprep.subr.mxu0 0.0
  %v1710 = vand.u32 %v1347, 4294901760
  %1711 = vmatpush1.msra.mxu0 %v1710
  %1712 = vmatprep.subr.mxu0 0.0
  %v1713 = vand.u32 %v1348, 4294901760
  %1714 = vmatpush1.msra.mxu0 %v1713
  %1715 = vmatprep.subr.mxu0 0.0
  %v1716 = vand.u32 %v1349, 4294901760
  %1717 = vmatpush1.msra.mxu0 %v1716
  %1718 = vmatprep.subr.mxu0 0.0
  %v1719 = vand.u32 %v1350, 4294901760
  %1720 = vmatpush1.msra.mxu0 %v1719
  %1721 = vmatprep.subr.mxu0 0.0
  %v1722 = vand.u32 %v1351, 4294901760
  %1723 = vmatpush1.msra.mxu0 %v1722
  %1724 = vmatprep.subr.mxu0 0.0
  %v1725 = vand.u32 %v1352, 4294901760
  %1726 = vmatpush1.msra.mxu0 %v1725
  %1727 = vmatprep.subr.mxu0 0.0
  %v1728 = vand.u32 %v1353, 4294901760
  %1729 = vmatpush1.msra.mxu0 %v1728
  %1730 = vmatprep.subr.mxu0 0.0
  %v1731 = vand.u32 %v1354, 4294901760
  %1732 = vmatpush1.msra.mxu0 %v1731
  %1733 = vmatprep.subr.mxu0 0.0
  %v1734 = vand.u32 %v1355, 4294901760
  %1735 = vmatpush1.msra.mxu0 %v1734
  %1736 = vmatprep.subr.mxu0 0.0
  %v1737 = vand.u32 %v1356, 4294901760
  %1738 = vmatpush1.msra.mxu0 %v1737
  %1739 = vmatprep.subr.mxu0 0.0
  %v1740 = vand.u32 %v1357, 4294901760
  %1741 = vmatpush1.msra.mxu0 %v1740
  %1742 = vmatprep.subr.mxu0 0.0
  %v1743 = vand.u32 %v1358, 4294901760
  %1744 = vmatpush1.msra.mxu0 %v1743
  %1745 = vmatprep.subr.mxu0 0.0
  %v1746 = vand.u32 %v1359, 4294901760
  %1747 = vmatpush1.msra.mxu0 %v1746
  %1748 = vmatprep.subr.mxu0 0.0
  %v1749 = vand.u32 %v1360, 4294901760
  %1750 = vmatpush1.msra.mxu0 %v1749
  %1751 = vmatprep.subr.mxu0 0.0
  %v1752 = vand.u32 %v1361, 4294901760
  %1753 = vmatpush1.msra.mxu0 %v1752
  %1754 = vmatprep.subr.mxu0 0.0
  %v1755 = vand.u32 %v1362, 4294901760
  %1756 = vmatpush1.msra.mxu0 %v1755
  %1757 = vmatprep.subr.mxu0 0.0
  %1758 = vmatpush1.msra.mxu0 0.0
  %1759 = vmatprep.subr.mxu0 0.0
  %1760 = vmatpush1.msra.mxu0 0.0
  %1761 = vmatprep.subr.mxu0 0.0
  %1762 = vmatpush1.msra.mxu0 0.0
  %1763 = vmatprep.subr.mxu0 0.0
  %1764 = vmatpush1.msra.mxu0 0.0
  %1765 = vmatprep.subr.mxu0 0.0
  %1766 = vmatpush1.msra.mxu0 0.0
  %1767 = vmatprep.subr.mxu0 0.0
  %1768 = vmatpush1.msra.mxu0 0.0
  %1769 = vmatprep.subr.mxu0 0.0
  %1770 = vmatpush1.msra.mxu0 0.0
  %1771 = vmatprep.subr.mxu0 0.0
  %1772 = vmatpush1.msra.mxu0 0.0
  %1773 = vmatprep.subr.mxu0 0.0
  %1774 = vmatpush1.msra.mxu0 0.0
  %1775 = vmatprep.subr.mxu0 0.0
  %1776 = vmatpush1.msra.mxu0 0.0
  %1777 = vmatprep.subr.mxu0 0.0
  %1778 = vmatpush1.msra.mxu0 0.0
  %1779 = vmatprep.subr.mxu0 0.0
  %1780 = vmatpush1.msra.mxu0 0.0
  %1781 = vmatprep.subr.mxu0 0.0
  %1782 = vmatpush1.msra.mxu0 0.0
  %1783 = vmatprep.subr.mxu0 0.0
  %1784 = vmatpush1.msra.mxu0 0.0
  %1785 = vmatprep.subr.mxu0 0.0
  %1786 = vmatpush1.msra.mxu0 0.0
  %1787 = vmatprep.subr.mxu0 0.0
  %1788 = vmatpush1.msra.mxu0 0.0
  %1789 = vmatprep.mubr.f32.mxu0 0.0
  %v1790 = vand.u32 %v1345, 4294901760
  %v1791 = vsub.f32 %v1345, %v1790
  %v1792 = vand.u32 %v1791, 4294901760
  %1793 = vmatmul.mubr.f32.gmra.mrb[0].mxu0 %v1792
  %v1794 = vpop.f32.mrb[0].mxu0
  %v1795 = vadd.f32 %v1706, %v1794
  %v1796 = vpop.f32.mrb[0].mxu0
  %1797 = vdwg.mxu0
  %1798 = vmatprep.subr.mxu0 0.0
  %v1799 = vand.u32 %v1347, 4294901760
  %v1800 = vsub.f32 %v1347, %v1799
  %v1801 = vand.u32 %v1800, 4294901760
  %1802 = vmatpush1.msra.mxu0 %v1801
  %1803 = vmatprep.subr.mxu0 0.0
  %v1804 = vand.u32 %v1348, 4294901760
  %v1805 = vsub.f32 %v1348, %v1804
  %v1806 = vand.u32 %v1805, 4294901760
  %1807 = vmatpush1.msra.mxu0 %v1806
  %1808 = vmatprep.subr.mxu0 0.0
  %v1809 = vand.u32 %v1349, 4294901760
  %v1810 = vsub.f32 %v1349, %v1809
  %v1811 = vand.u32 %v1810, 4294901760
  %1812 = vmatpush1.msra.mxu0 %v1811
  %1813 = vmatprep.subr.mxu0 0.0
  %v1814 = vand.u32 %v1350, 4294901760
  %v1815 = vsub.f32 %v1350, %v1814
  %v1816 = vand.u32 %v1815, 4294901760
  %1817 = vmatpush1.msra.mxu0 %v1816
  %1818 = vmatprep.subr.mxu0 0.0
  %v1819 = vand.u32 %v1351, 4294901760
  %v1820 = vsub.f32 %v1351, %v1819
  %v1821 = vand.u32 %v1820, 4294901760
  %1822 = vmatpush1.msra.mxu0 %v1821
  %1823 = vmatprep.subr.mxu0 0.0
  %v1824 = vand.u32 %v1352, 4294901760
  %v1825 = vsub.f32 %v1352, %v1824
  %v1826 = vand.u32 %v1825, 4294901760
  %1827 = vmatpush1.msra.mxu0 %v1826
  %1828 = vmatprep.subr.mxu0 0.0
  %v1829 = vand.u32 %v1353, 4294901760
  %v1830 = vsub.f32 %v1353, %v1829
  %v1831 = vand.u32 %v1830, 4294901760
  %1832 = vmatpush1.msra.mxu0 %v1831
  %1833 = vmatprep.subr.mxu0 0.0
  %v1834 = vand.u32 %v1354, 4294901760
  %v1835 = vsub.f32 %v1354, %v1834
  %v1836 = vand.u32 %v1835, 4294901760
  %1837 = vmatpush1.msra.mxu0 %v1836
  %1838 = vmatprep.subr.mxu0 0.0
  %v1839 = vand.u32 %v1355, 4294901760
  %v1840 = vsub.f32 %v1355, %v1839
  %v1841 = vand.u32 %v1840, 4294901760
  %1842 = vmatpush1.msra.mxu0 %v1841
  %1843 = vmatprep.subr.mxu0 0.0
  %v1844 = vand.u32 %v1356, 4294901760
  %v1845 = vsub.f32 %v1356, %v1844
  %v1846 = vand.u32 %v1845, 4294901760
  %1847 = vmatpush1.msra.mxu0 %v1846
  %1848 = vmatprep.subr.mxu0 0.0
  %v1849 = vand.u32 %v1357, 4294901760
  %v1850 = vsub.f32 %v1357, %v1849
  %v1851 = vand.u32 %v1850, 4294901760
  %1852 = vmatpush1.msra.mxu0 %v1851
  %1853 = vmatprep.subr.mxu0 0.0
  %v1854 = vand.u32 %v1358, 4294901760
  %v1855 = vsub.f32 %v1358, %v1854
  %v1856 = vand.u32 %v1855, 4294901760
  %1857 = vmatpush1.msra.mxu0 %v1856
  %1858 = vmatprep.subr.mxu0 0.0
  %v1859 = vand.u32 %v1359, 4294901760
  %v1860 = vsub.f32 %v1359, %v1859
  %v1861 = vand.u32 %v1860, 4294901760
  %1862 = vmatpush1.msra.mxu0 %v1861
  %1863 = vmatprep.subr.mxu0 0.0
  %v1864 = vand.u32 %v1360, 4294901760
  %v1865 = vsub.f32 %v1360, %v1864
  %v1866 = vand.u32 %v1865, 4294901760
  %1867 = vmatpush1.msra.mxu0 %v1866
  %1868 = vmatprep.subr.mxu0 0.0
  %v1869 = vand.u32 %v1361, 4294901760
  %v1870 = vsub.f32 %v1361, %v1869
  %v1871 = vand.u32 %v1870, 4294901760
  %1872 = vmatpush1.msra.mxu0 %v1871
  %1873 = vmatprep.subr.mxu0 0.0
  %v1874 = vand.u32 %v1362, 4294901760
  %v1875 = vsub.f32 %v1362, %v1874
  %v1876 = vand.u32 %v1875, 4294901760
  %1877 = vmatpush1.msra.mxu0 %v1876
  %1878 = vmatprep.subr.mxu0 0.0
  %1879 = vmatpush1.msra.mxu0 0.0
  %1880 = vmatprep.subr.mxu0 0.0
  %1881 = vmatpush1.msra.mxu0 0.0
  %1882 = vmatprep.subr.mxu0 0.0
  %1883 = vmatpush1.msra.mxu0 0.0
  %1884 = vmatprep.subr.mxu0 0.0
  %1885 = vmatpush1.msra.mxu0 0.0
  %1886 = vmatprep.subr.mxu0 0.0
  %1887 = vmatpush1.msra.mxu0 0.0
  %1888 = vmatprep.subr.mxu0 0.0
  %1889 = vmatpush1.msra.mxu0 0.0
  %1890 = vmatprep.subr.mxu0 0.0
  %1891 = vmatpush1.msra.mxu0 0.0
  %1892 = vmatprep.subr.mxu0 0.0
  %1893 = vmatpush1.msra.mxu0 0.0
  %1894 = vmatprep.subr.mxu0 0.0
  %1895 = vmatpush1.msra.mxu0 0.0
  %1896 = vmatprep.subr.mxu0 0.0
  %1897 = vmatpush1.msra.mxu0 0.0
  %1898 = vmatprep.subr.mxu0 0.0
  %1899 = vmatpush1.msra.mxu0 0.0
  %1900 = vmatprep.subr.mxu0 0.0
  %1901 = vmatpush1.msra.mxu0 0.0
  %1902 = vmatprep.subr.mxu0 0.0
  %1903 = vmatpush1.msra.mxu0 0.0
  %1904 = vmatprep.subr.mxu0 0.0
  %1905 = vmatpush1.msra.mxu0 0.0
  %1906 = vmatprep.subr.mxu0 0.0
  %1907 = vmatpush1.msra.mxu0 0.0
  %1908 = vmatprep.subr.mxu0 0.0
  %1909 = vmatpush1.msra.mxu0 0.0
  %1910 = vmatprep.mubr.f32.mxu0 0.0
  %v1911 = vand.u32 %v1345, 4294901760
  %1912 = vmatmul.mubr.f32.gmra.mrb[0].mxu0 %v1911
  %v1913 = vpop.f32.mrb[0].mxu0
  %v1914 = vadd.f32 %v1795, %v1913
  %v1915 = vpop.f32.mrb[0].mxu0
  %1916 = vdwg.mxu0
  %1917 = vmatprep.subr.mxu0 0.0
  %v1918 = vand.u32 %v1347, 4294901760
  %1919 = vmatpush1.msra.mxu0 %v1918
  %1920 = vmatprep.subr.mxu0 0.0
  %v1921 = vand.u32 %v1348, 4294901760
  %1922 = vmatpush1.msra.mxu0 %v1921
  %1923 = vmatprep.subr.mxu0 0.0
  %v1924 = vand.u32 %v1349, 4294901760
  %1925 = vmatpush1.msra.mxu0 %v1924
  %1926 = vmatprep.subr.mxu0 0.0
  %v1927 = vand.u32 %v1350, 4294901760
  %1928 = vmatpush1.msra.mxu0 %v1927
  %1929 = vmatprep.subr.mxu0 0.0
  %v1930 = vand.u32 %v1351, 4294901760
  %1931 = vmatpush1.msra.mxu0 %v1930
  %1932 = vmatprep.subr.mxu0 0.0
  %v1933 = vand.u32 %v1352, 4294901760
  %1934 = vmatpush1.msra.mxu0 %v1933
  %1935 = vmatprep.subr.mxu0 0.0
  %v1936 = vand.u32 %v1353, 4294901760
  %1937 = vmatpush1.msra.mxu0 %v1936
  %1938 = vmatprep.subr.mxu0 0.0
  %v1939 = vand.u32 %v1354, 4294901760
  %1940 = vmatpush1.msra.mxu0 %v1939
  %1941 = vmatprep.subr.mxu0 0.0
  %v1942 = vand.u32 %v1355, 4294901760
  %1943 = vmatpush1.msra.mxu0 %v1942
  %1944 = vmatprep.subr.mxu0 0.0
  %v1945 = vand.u32 %v1356, 4294901760
  %1946 = vmatpush1.msra.mxu0 %v1945
  %1947 = vmatprep.subr.mxu0 0.0
  %v1948 = vand.u32 %v1357, 4294901760
  %1949 = vmatpush1.msra.mxu0 %v1948
  %1950 = vmatprep.subr.mxu0 0.0
  %v1951 = vand.u32 %v1358, 4294901760
  %1952 = vmatpush1.msra.mxu0 %v1951
  %1953 = vmatprep.subr.mxu0 0.0
  %v1954 = vand.u32 %v1359, 4294901760
  %1955 = vmatpush1.msra.mxu0 %v1954
  %1956 = vmatprep.subr.mxu0 0.0
  %v1957 = vand.u32 %v1360, 4294901760
  %1958 = vmatpush1.msra.mxu0 %v1957
  %1959 = vmatprep.subr.mxu0 0.0
  %v1960 = vand.u32 %v1361, 4294901760
  %1961 = vmatpush1.msra.mxu0 %v1960
  %1962 = vmatprep.subr.mxu0 0.0
  %v1963 = vand.u32 %v1362, 4294901760
  %1964 = vmatpush1.msra.mxu0 %v1963
  %1965 = vmatprep.subr.mxu0 0.0
  %1966 = vmatpush1.msra.mxu0 0.0
  %1967 = vmatprep.subr.mxu0 0.0
  %1968 = vmatpush1.msra.mxu0 0.0
  %1969 = vmatprep.subr.mxu0 0.0
  %1970 = vmatpush1.msra.mxu0 0.0
  %1971 = vmatprep.subr.mxu0 0.0
  %1972 = vmatpush1.msra.mxu0 0.0
  %1973 = vmatprep.subr.mxu0 0.0
  %1974 = vmatpush1.msra.mxu0 0.0
  %1975 = vmatprep.subr.mxu0 0.0
  %1976 = vmatpush1.msra.mxu0 0.0
  %1977 = vmatprep.subr.mxu0 0.0
  %1978 = vmatpush1.msra.mxu0 0.0
  %1979 = vmatprep.subr.mxu0 0.0
  %1980 = vmatpush1.msra.mxu0 0.0
  %1981 = vmatprep.subr.mxu0 0.0
  %1982 = vmatpush1.msra.mxu0 0.0
  %1983 = vmatprep.subr.mxu0 0.0
  %1984 = vmatpush1.msra.mxu0 0.0
  %1985 = vmatprep.subr.mxu0 0.0
  %1986 = vmatpush1.msra.mxu0 0.0
  %1987 = vmatprep.subr.mxu0 0.0
  %1988 = vmatpush1.msra.mxu0 0.0
  %1989 = vmatprep.subr.mxu0 0.0
  %1990 = vmatpush1.msra.mxu0 0.0
  %1991 = vmatprep.subr.mxu0 0.0
  %1992 = vmatpush1.msra.mxu0 0.0
  %1993 = vmatprep.subr.mxu0 0.0
  %1994 = vmatpush1.msra.mxu0 0.0
  %1995 = vmatprep.subr.mxu0 0.0
  %1996 = vmatpush1.msra.mxu0 0.0
  %1997 = vmatprep.mubr.f32.mxu0 0.0
  %v1998 = vand.u32 %v1345, 4294901760
  %1999 = vmatmul.mubr.f32.gmra.mrb[0].mxu0 %v1998
  %v2000 = vpop.f32.mrb[0].mxu0
  %v2001 = vadd.f32 %v1914, %v2000
  %v2002 = vpop.f32.mrb[0].mxu0
  %2003 = vdwg.mxu0
  %v2004 = vmul.f32 %v14, %v2001
  %v2005 = vld [vmem:[%s2 + $0x2] sm:$0x1]
  %v2006 = vlaneseq
  %v2007 = vshrl.u32 %v2006, 7
  %v2008 = vsub.s32 0, %v2007
  %v2009 = vrot.slane %v2005, %v2008
  %v2010 = vadd.f32 %v2004, %v2009
  %v2011 = vadd.f32 %v2010, %v1345
  %2012 = vst [vmem:[%s3] sm:$0xff] %v2011
  // Predicated region
  $region14: #{cross_network.1} parent=0 // pred_check
    _
  $region15: #{cross_network.1} parent=0 // pred_check_branch
    %2014 = sbr.rel (0) target = $region17
  $region16: #{cross_network.1} parent=0 // pred_region
    _
  $region17: #{cross_network.1} parent=0 // pred_fallthru
    _
  // Predicated region
  $region18: #{cross_network.1} parent=0 // pred_check
    _
  $region19: #{cross_network.1} parent=0 // pred_check_branch
    %2016 = sbr.rel (0) target = $region21
  $region20: #{cross_network.1} parent=0 // pred_region
    _
  $region21: #{cross_network.1} parent=0 // pred_fallthru
    _

</llo_original>
